<compile_context>
chip_gen: v7x
topology: tpu7x:2x2x1
jax: 0.10.0
libtpu: 0.0.40
codegen_flags: <defaults>
</compile_context>

<pallas_src>
import math
import functools

import jax
import jax.numpy as jnp
from jax.experimental import pallas as pl
from jax.experimental.pallas import tpu as pltpu


def _encoder_layer_kernel(x_ref, pe_ref,
                          wqkv_ref, bqkv_ref,
                          wo_ref, bo_ref,
                          g1_ref, be1_ref,
                          w1_ref, b1_ref, w2_ref, b2_ref,
                          g2_ref, be2_ref,
                          out_ref, *, nhead):
    """One grid step processes TB full sequences: x_ref block is (TB, S, D)."""
    TB, S, D = x_ref.shape
    R = TB * S
    dk = D // nhead
    inv_d = 1.0 / D

    # Positional encoding (broadcast over the TB sequences in this block).
    xs = x_ref[...] + pe_ref[...]                       # (TB, S, D) f32
    x2d = xs.reshape(R, D)                              # flattened rows for big matmuls

    # --- Fused QKV projection: one (R, D) x (D, 3D) bf16 matmul, f32 accumulation.
    # The 1/sqrt(dk) softmax scale is pre-folded into the Q columns at pack time.
    qkv = jnp.dot(x2d.astype(jnp.bfloat16), wqkv_ref[...],
                  preferred_element_type=jnp.float32) + bqkv_ref[...]   # (R, 3D) f32
    q = qkv[:, :D].reshape(TB, S, D).astype(jnp.bfloat16)
    k = qkv[:, D:2 * D].reshape(TB, S, D).astype(jnp.bfloat16)
    v = qkv[:, 2 * D:].reshape(TB, S, D).astype(jnp.bfloat16)

    # --- Multi-head self-attention. Short static head loop; each head's context
    # is folded directly into the output projection via its wo row-slice and
    # accumulated, so no lane-axis concat and no extra live head tensors.
    # TODO(synk): for long S this materializes a (TB, S, S) f32 score block per
    # head; a flash-style KV-blocked online softmax would be needed there.
    attn = jnp.zeros((R, D), jnp.float32)
    for h in range(nhead):
        sl = slice(h * dk, (h + 1) * dk)
        s = jnp.einsum('bqd,bkd->bqk', q[:, :, sl], k[:, :, sl],
                       preferred_element_type=jnp.float32)       # (TB, S, S) f32
        s = s - jnp.max(s, axis=-1, keepdims=True)                # stable softmax
        p = jnp.exp(s)
        p = p * pl.reciprocal(jnp.sum(p, axis=-1, keepdims=True), approx=True)
        o = jnp.einsum('bqk,bkd->bqd', p.astype(jnp.bfloat16), v[:, :, sl],
                       preferred_element_type=jnp.float32)       # (TB, S, dk) f32
        attn = attn + jnp.dot(o.reshape(R, dk).astype(jnp.bfloat16),
                              wo_ref[h * dk:(h + 1) * dk, :],
                              preferred_element_type=jnp.float32)
    attn = attn + bo_ref[...]                                     # (R, D) f32

    def _ln(t, g, b, eps=1e-5):
        # Two-pass LayerNorm (subtract mean first): avoids E[x^2]-E[x]^2
        # cancellation when the residual-stream mean is large.
        mu = jnp.sum(t, axis=-1, keepdims=True) * inv_d
        d = t - mu
        var = jnp.sum(d * d, axis=-1, keepdims=True) * inv_d
        return d * jax.lax.rsqrt(var + eps) * g + b

    # Post-norm (PyTorch default norm_first=False); dropout is identity (eval).
    y1 = _ln(x2d + attn, g1_ref[...], be1_ref[...])

    # --- Feed-forward: Linear(D, 4D) -> ReLU -> Linear(4D, D), bf16 matmuls.
    # ReLU output is cast to bf16 immediately so only a bf16 (R, dff) block is
    # live (halves the largest activation; dff-tiling would shrink it further).
    h1 = jnp.maximum(
        jnp.dot(y1.astype(jnp.bfloat16), w1_ref[...],
                preferred_element_type=jnp.float32) + b1_ref[...],
        0.0).astype(jnp.bfloat16)                                 # (R, dff) bf16
    ff = jnp.dot(h1, w2_ref[...],
                 preferred_element_type=jnp.float32) + b2_ref[...]

    y2 = _ln(y1 + ff, g2_ref[...], be2_ref[...])
    out_ref[...] = y2.reshape(TB, S, D).astype(out_ref.dtype)


def positional_encoding(length, d_model):
    """Matches SimpleTransformerEncoder._generate_positional_encoding."""
    position = jnp.arange(length, dtype=jnp.float32)[:, None]
    div_term = jnp.exp(jnp.arange(0, d_model, 2, dtype=jnp.float32)
                       * (-math.log(10000.0) / d_model))
    pe = jnp.zeros((length, d_model), jnp.float32)
    pe = pe.at[:, 0::2].set(jnp.sin(position * div_term))
    pe = pe.at[:, 1::2].set(jnp.cos(position * div_term))
    return pe


def init_params(key, d_model, nhead):
    assert d_model % nhead == 0
    dff = 4 * d_model
    ks = jax.random.split(key, 8)
    sc = 0.05

    def w(k, shape):
        return (sc * jax.random.normal(k, shape)).astype(jnp.float32)

    return {
        "wq": w(ks[0], (d_model, d_model)),
        "wk": w(ks[1], (d_model, d_model)),
        "wv": w(ks[2], (d_model, d_model)),
        "bq": w(ks[3], (1, d_model)),
        "bk": w(ks[4], (1, d_model)),
        "bv": w(ks[5], (1, d_model)),
        "wo": w(ks[6], (d_model, d_model)),
        "bo": jnp.zeros((1, d_model), jnp.float32),
        "g1": jnp.ones((1, d_model), jnp.float32),
        "be1": jnp.zeros((1, d_model), jnp.float32),
        "w1": w(ks[7], (d_model, dff)),
        "b1": jnp.zeros((1, dff), jnp.float32),
        "w2": w(jax.random.fold_in(key, 99), (dff, d_model)),
        "b2": jnp.zeros((1, d_model), jnp.float32),
        "g2": jnp.ones((1, d_model), jnp.float32),
        "be2": jnp.zeros((1, d_model), jnp.float32),
    }


def pack_params(params, nhead):
    """One-time weight packing (hoisted out of the per-call wrapper):
    fused bf16 (D, 3D) QKV weight with 1/sqrt(dk) folded into the Q columns,
    plus bf16 casts of the other matmul weights."""
    D = params["wq"].shape[0]
    dk = D // nhead
    scale = 1.0 / math.sqrt(dk)
    wqkv = jnp.concatenate([params["wq"] * scale, params["wk"], params["wv"]],
                           axis=1).astype(jnp.bfloat16)
    bqkv = jnp.concatenate([params["bq"] * scale, params["bk"], params["bv"]],
                           axis=1).astype(jnp.float32)
    return {
        "wqkv": wqkv, "bqkv": bqkv,
        "wo": params["wo"].astype(jnp.bfloat16), "bo": params["bo"],
        "g1": params["g1"], "be1": params["be1"],
        "w1": params["w1"].astype(jnp.bfloat16), "b1": params["b1"],
        "w2": params["w2"].astype(jnp.bfloat16), "b2": params["b2"],
        "g2": params["g2"], "be2": params["be2"],
    }


def _vmem_capacity_bytes():
    try:
        return int(pltpu.get_tpu_info().vmem_capacity_bytes)
    except Exception:
        return 64 * 1024 * 1024   # conservative default (v7x-sized VMEM)


def _resident_spec(a):
    """Full-array, grid-invariant spec, single-buffered: a second pipeline buffer
    of weights that never change across grid steps is pure VMEM waste."""
    n = a.ndim
    idx = lambda b, _n=n: (0,) * _n
    try:
        return pl.BlockSpec(a.shape, idx, pipeline_mode=pl.Buffered(1))
    except Exception:   # fall back for jax versions without pipeline_mode/Buffered
        return pl.BlockSpec(a.shape, idx)


def _pick_block_b(B, S, D, dff, target_rows, vmem_budget):
    """Largest divisor of B whose activation block fits next to the resident bf16
    weights, capped at ~target_rows flattened rows and at B//2 so the grid has
    at least 2 steps (keeps both v7x TensorCores busy)."""
    weight_bytes = 2 * (3 * D * D + D * D + 2 * D * dff)      # bf16, single-buffered
    # Rough live-activation bytes per sequence: f32 xs/qkv/attn/y1/ff/y2 rows,
    # bf16 q/k/v + FFN hidden, and one head's f32 (S, S) scores + probabilities.
    per_seq = 4 * S * (8 * D + 2 * S) + 2 * S * (3 * D + dff)
    avail = max(vmem_budget - weight_bytes, per_seq)
    tb = max(1, min(B, target_rows // max(S, 1), avail // per_seq))
    if B >= 2:
        tb = min(tb, B // 2)
    while B % tb:
        tb -= 1
    return tb


def simple_transformer_encoder(x, packed, nhead, *, block_b=None):
    """x: (B, S, D) f32; packed: output of pack_params()."""
    B, S, D = x.shape
    assert D % nhead == 0
    dff = packed["w1"].shape[1]
    pe = positional_encoding(S, D)

    # Per-chip sizing: use most of the 128 MiB VMEM on v5e/v6e, stay under the
    # 64 MiB physical budget on v7x.
    big_vmem = _vmem_capacity_bytes() >= 100 * 1024 * 1024
    vmem_limit = (100 if big_vmem else 48) * 1024 * 1024
    target_rows = 2048 if big_vmem else 1024

    if block_b is None:
        TB = _pick_block_b(B, S, D, dff, target_rows, int(0.6 * vmem_limit))
    else:
        TB = block_b
    assert B % TB == 0

    args = [x, pe, packed["wqkv"], packed["bqkv"], packed["wo"], packed["bo"],
            packed["g1"], packed["be1"], packed["w1"], packed["b1"],
            packed["w2"], packed["b2"], packed["g2"], packed["be2"]]

    # NOTE: for real models D (and dff) should be multiples of 128 so output
    # stores are lane-dense (unmasked vst); at the toy D<128 the stores are
    # masked. Folding (S, D) into one 128-multiple last dim in the wrapper would
    # fix it at the cost of an in-kernel relayout reshape.
    in_specs = ([pl.BlockSpec((TB, S, D), lambda b: (b, 0, 0))]   # x: TB sequences/step
                + [_resident_spec(a) for a in args[1:]])          # pe + weights resident

    flops = int(2 * B * S * D * (3 * D + D + 2 * dff) + 4 * B * S * S * D)
    transcendentals = int(B * nhead * S * S)
    bytes_accessed = int(sum(int(a.size) * a.dtype.itemsize for a in args)
                         + B * S * D * x.dtype.itemsize)

    kernel = functools.partial(_encoder_layer_kernel, nhead=nhead)
    return pl.pallas_call(
        kernel,
        out_shape=jax.ShapeDtypeStruct((B, S, D), x.dtype),
        grid=(B // TB,),
        in_specs=in_specs,
        out_specs=pl.BlockSpec((TB, S, D), lambda b: (b, 0, 0)),
        compiler_params=pltpu.CompilerParams(
            dimension_semantics=("parallel",),          # shards grid across TCs on v7x
            vmem_limit_bytes=vmem_limit),
        cost_estimate=pl.CostEstimate(flops=flops,
                                      transcendentals=transcendentals,
                                      bytes_accessed=bytes_accessed),
    )(*args)


def _reference_forward(x, params, nhead):
    """Pure-JAX f32 reference mirroring the PyTorch forward (eval mode)."""
    B, S, D = x.shape
    dk = D // nhead
    xs = x + positional_encoding(S, D)[None]

    def ln(t, g, b, eps=1e-5):
        mu = jnp.mean(t, axis=-1, keepdims=True)
        var = jnp.mean((t - mu) ** 2, axis=-1, keepdims=True)
        return (t - mu) / jnp.sqrt(var + eps) * g + b

    q = (xs @ params["wq"] + params["bq"]).reshape(B, S, nhead, dk).transpose(0, 2, 1, 3)
    k = (xs @ params["wk"] + params["bk"]).reshape(B, S, nhead, dk).transpose(0, 2, 1, 3)
    v = (xs @ params["wv"] + params["bv"]).reshape(B, S, nhead, dk).transpose(0, 2, 1, 3)
    s = jnp.einsum('bhqd,bhkd->bhqk', q, k) / math.sqrt(dk)
    p = jax.nn.softmax(s, axis=-1)
    o = jnp.einsum('bhqk,bhkd->bhqd', p, v).transpose(0, 2, 1, 3).reshape(B, S, D)
    o = o @ params["wo"] + params["bo"]
    y1 = ln(xs + o, params["g1"], params["be1"])
    ff = jnp.maximum(y1 @ params["w1"] + params["b1"], 0.0)
    ff = ff @ params["w2"] + params["b2"]
    return ln(y1 + ff, params["g2"], params["be2"])


if __name__ == "__main__":
    B, S, D, H = 2, 8, 32, 4
    key = jax.random.PRNGKey(0)
    kx, kp = jax.random.split(key)
    x = jax.random.normal(kx, (B, S, D), dtype=jnp.float32)
    params = init_params(kp, D, H)
    packed = pack_params(params, H)      # one-time packing, hoisted out of the call

    out = simple_transformer_encoder(x, packed, H)
    jax.block_until_ready(out)
    assert out.shape == (B, S, D)

    ref = _reference_forward(x, params, H)
    err = float(jnp.max(jnp.abs(out - ref)))
    assert err < 0.1, f"max abs error vs f32 reference too large: {err}"
    print("KERNEL_OK")
</pallas_src>

<mosaic_0001>
module attributes {stable_mosaic.version = 11 : i64} {
  func.func @_encoder_layer_kernel(%arg0: i32, %arg1: memref<1x8x32xf32, #tpu.memory_space<vmem>>, %arg2: memref<8x32xf32, #tpu.memory_space<vmem>>, %arg3: memref<32x96xbf16, #tpu.memory_space<vmem>>, %arg4: memref<1x96xf32, #tpu.memory_space<vmem>>, %arg5: memref<32x32xbf16, #tpu.memory_space<vmem>>, %arg6: memref<1x32xf32, #tpu.memory_space<vmem>>, %arg7: memref<1x32xf32, #tpu.memory_space<vmem>>, %arg8: memref<1x32xf32, #tpu.memory_space<vmem>>, %arg9: memref<32x128xbf16, #tpu.memory_space<vmem>>, %arg10: memref<1x128xf32, #tpu.memory_space<vmem>>, %arg11: memref<128x32xbf16, #tpu.memory_space<vmem>>, %arg12: memref<1x32xf32, #tpu.memory_space<vmem>>, %arg13: memref<1x32xf32, #tpu.memory_space<vmem>>, %arg14: memref<1x32xf32, #tpu.memory_space<vmem>>, %arg15: memref<1x8x32xf32, #tpu.memory_space<vmem>>) attributes {dimension_semantics = [#tpu.dimension_semantics<parallel>], iteration_bounds = array<i64: 2>, scalar_prefetch = 0 : i64, scratch_operands = 0 : i64, tpu.core_type = #tpu.core_type<tc>, window_params = [{transform_indices = @transform_0, window_bounds = array<i64: 1, 8, 32>}, {pipeline_mode = #tpu.pipeline_mode<synchronous>, transform_indices = @transform_1, window_bounds = array<i64: 8, 32>}, {pipeline_mode = #tpu.pipeline_mode<synchronous>, transform_indices = @transform_2, window_bounds = array<i64: 32, 96>}, {pipeline_mode = #tpu.pipeline_mode<synchronous>, transform_indices = @transform_3, window_bounds = array<i64: 1, 96>}, {pipeline_mode = #tpu.pipeline_mode<synchronous>, transform_indices = @transform_4, window_bounds = array<i64: 32, 32>}, {pipeline_mode = #tpu.pipeline_mode<synchronous>, transform_indices = @transform_5, window_bounds = array<i64: 1, 32>}, {pipeline_mode = #tpu.pipeline_mode<synchronous>, transform_indices = @transform_6, window_bounds = array<i64: 1, 32>}, {pipeline_mode = #tpu.pipeline_mode<synchronous>, transform_indices = @transform_7, window_bounds = array<i64: 1, 32>}, {pipeline_mode = #tpu.pipeline_mode<synchronous>, transform_indices = @transform_8, window_bounds = array<i64: 32, 128>}, {pipeline_mode = #tpu.pipeline_mode<synchronous>, transform_indices = @transform_9, window_bounds = array<i64: 1, 128>}, {pipeline_mode = #tpu.pipeline_mode<synchronous>, transform_indices = @transform_10, window_bounds = array<i64: 128, 32>}, {pipeline_mode = #tpu.pipeline_mode<synchronous>, transform_indices = @transform_11, window_bounds = array<i64: 1, 32>}, {pipeline_mode = #tpu.pipeline_mode<synchronous>, transform_indices = @transform_12, window_bounds = array<i64: 1, 32>}, {pipeline_mode = #tpu.pipeline_mode<synchronous>, transform_indices = @transform_13, window_bounds = array<i64: 1, 32>}, {transform_indices = @transform_14, window_bounds = array<i64: 1, 8, 32>}]} {
    %c0 = arith.constant 0 : index
    %c0_0 = arith.constant 0 : index
    %c0_1 = arith.constant 0 : index
    %0 = vector.load %arg1[%c0, %c0_0, %c0_1] : memref<1x8x32xf32, #tpu.memory_space<vmem>>, vector<1x8x32xf32>
    %c0_2 = arith.constant 0 : index
    %c0_3 = arith.constant 0 : index
    %1 = vector.load %arg2[%c0_2, %c0_3] : memref<8x32xf32, #tpu.memory_space<vmem>>, vector<8x32xf32>
    %2 = vector.shape_cast %1 : vector<8x32xf32> to vector<1x8x32xf32>
    %3 = arith.addf %0, %2 : vector<1x8x32xf32>
    %4 = vector.shape_cast %3 : vector<1x8x32xf32> to vector<8x32xf32>
    %5 = arith.truncf %4 : vector<8x32xf32> to vector<8x32xbf16>
    %c0_4 = arith.constant 0 : index
    %c0_5 = arith.constant 0 : index
    %6 = vector.load %arg3[%c0_4, %c0_5] : memref<32x96xbf16, #tpu.memory_space<vmem>>, vector<32x96xbf16>
    %cst = arith.constant dense<0.000000e+00> : vector<8x96xf32>
    %7 = tpu.matmul %5, %6, %cst {dimension_numbers = #tpu.dot_dimension_numbers<[1], [0], [0], [1], [0, 0, 1, 1], [], []>} : vector<8x32xbf16>, vector<32x96xbf16>, vector<8x96xf32> -> vector<8x96xf32>
    %c0_6 = arith.constant 0 : index
    %c0_7 = arith.constant 0 : index
    %8 = vector.load %arg4[%c0_6, %c0_7] : memref<1x96xf32, #tpu.memory_space<vmem>>, vector<1x96xf32>
    %9 = vector.broadcast %8 : vector<1x96xf32> to vector<8x96xf32>
    %10 = arith.addf %7, %9 : vector<8x96xf32>
    %11 = vector.extract_strided_slice %10 {offsets = [0, 0], sizes = [8, 32], strides = [1, 1]} : vector<8x96xf32> to vector<8x32xf32>
    %12 = vector.shape_cast %11 : vector<8x32xf32> to vector<1x8x32xf32>
    %13 = arith.truncf %12 : vector<1x8x32xf32> to vector<1x8x32xbf16>
    %14 = vector.extract_strided_slice %10 {offsets = [0, 32], sizes = [8, 32], strides = [1, 1]} : vector<8x96xf32> to vector<8x32xf32>
    %15 = vector.shape_cast %14 : vector<8x32xf32> to vector<1x8x32xf32>
    %16 = arith.truncf %15 : vector<1x8x32xf32> to vector<1x8x32xbf16>
    %17 = vector.extract_strided_slice %10 {offsets = [0, 64], sizes = [8, 32], strides = [1, 1]} : vector<8x96xf32> to vector<8x32xf32>
    %18 = vector.shape_cast %17 : vector<8x32xf32> to vector<1x8x32xf32>
    %19 = arith.truncf %18 : vector<1x8x32xf32> to vector<1x8x32xbf16>
    %cst_8 = arith.constant 0.000000e+00 : f32
    %20 = vector.broadcast %cst_8 : f32 to vector<8x32xf32>
    %21 = vector.extract_strided_slice %13 {offsets = [0, 0, 0], sizes = [1, 8, 8], strides = [1, 1, 1]} : vector<1x8x32xbf16> to vector<1x8x8xbf16>
    %22 = vector.extract_strided_slice %16 {offsets = [0, 0, 0], sizes = [1, 8, 8], strides = [1, 1, 1]} : vector<1x8x32xbf16> to vector<1x8x8xbf16>
    "tpu.trace_start"() <{level = 10 : i32, message = "bqd,bkd->bqk"}> : () -> ()
    %cst_9 = arith.constant dense<0.000000e+00> : vector<1x8x8xf32>
    %23 = tpu.matmul %21, %22, %cst_9 {dimension_numbers = #tpu.dot_dimension_numbers<[2], [2], [1], [1], [0, 0, 0, 1, 1, 1], [0], [0]>} : vector<1x8x8xbf16>, vector<1x8x8xbf16>, vector<1x8x8xf32> -> vector<1x8x8xf32>
    "tpu.trace_stop"() : () -> ()
    %cst_10 = arith.constant dense<0xFF800000> : vector<1x8xf32>
    %24 = vector.multi_reduction <maximumf>, %23, %cst_10 [2] : vector<1x8x8xf32> to vector<1x8xf32>
    %25 = vector.shape_cast %24 : vector<1x8xf32> to vector<1x8x1xf32>
    %26 = vector.broadcast %25 : vector<1x8x1xf32> to vector<1x8x8xf32>
    %27 = arith.subf %23, %26 : vector<1x8x8xf32>
    %28 = math.exp %27 : vector<1x8x8xf32>
    %cst_11 = arith.constant dense<0.000000e+00> : vector<1x8xf32>
    %29 = vector.multi_reduction <add>, %28, %cst_11 [2] : vector<1x8x8xf32> to vector<1x8xf32>
    %30 = vector.shape_cast %29 : vector<1x8xf32> to vector<1x8x1xf32>
    %31 = tpu.reciprocal %30 {approx = true} : vector<1x8x1xf32> -> vector<1x8x1xf32>
    %32 = vector.broadcast %31 : vector<1x8x1xf32> to vector<1x8x8xf32>
    %33 = arith.mulf %28, %32 : vector<1x8x8xf32>
    %34 = arith.truncf %33 : vector<1x8x8xf32> to vector<1x8x8xbf16>
    %35 = vector.extract_strided_slice %19 {offsets = [0, 0, 0], sizes = [1, 8, 8], strides = [1, 1, 1]} : vector<1x8x32xbf16> to vector<1x8x8xbf16>
    "tpu.trace_start"() <{level = 10 : i32, message = "bqk,bkd->bqd"}> : () -> ()
    %cst_12 = arith.constant dense<0.000000e+00> : vector<1x8x8xf32>
    %36 = tpu.matmul %34, %35, %cst_12 {dimension_numbers = #tpu.dot_dimension_numbers<[2], [1], [1], [2], [0, 0, 0, 1, 1, 2], [0], [0]>} : vector<1x8x8xbf16>, vector<1x8x8xbf16>, vector<1x8x8xf32> -> vector<1x8x8xf32>
    "tpu.trace_stop"() : () -> ()
    %37 = vector.shape_cast %36 : vector<1x8x8xf32> to vector<8x8xf32>
    %38 = arith.truncf %37 : vector<8x8xf32> to vector<8x8xbf16>
    %c0_13 = arith.constant 0 : index
    %c0_14 = arith.constant 0 : index
    %39 = vector.load %arg5[%c0_13, %c0_14] : memref<32x32xbf16, #tpu.memory_space<vmem>>, vector<8x32xbf16>
    %cst_15 = arith.constant dense<0.000000e+00> : vector<8x32xf32>
    %40 = tpu.matmul %38, %39, %cst_15 {dimension_numbers = #tpu.dot_dimension_numbers<[1], [0], [0], [1], [0, 0, 1, 1], [], []>} : vector<8x8xbf16>, vector<8x32xbf16>, vector<8x32xf32> -> vector<8x32xf32>
    %41 = arith.addf %20, %40 : vector<8x32xf32>
    %42 = vector.extract_strided_slice %13 {offsets = [0, 0, 8], sizes = [1, 8, 8], strides = [1, 1, 1]} : vector<1x8x32xbf16> to vector<1x8x8xbf16>
    %43 = vector.extract_strided_slice %16 {offsets = [0, 0, 8], sizes = [1, 8, 8], strides = [1, 1, 1]} : vector<1x8x32xbf16> to vector<1x8x8xbf16>
    "tpu.trace_start"() <{level = 10 : i32, message = "bqd,bkd->bqk"}> : () -> ()
    %cst_16 = arith.constant dense<0.000000e+00> : vector<1x8x8xf32>
    %44 = tpu.matmul %42, %43, %cst_16 {dimension_numbers = #tpu.dot_dimension_numbers<[2], [2], [1], [1], [0, 0, 0, 1, 1, 1], [0], [0]>} : vector<1x8x8xbf16>, vector<1x8x8xbf16>, vector<1x8x8xf32> -> vector<1x8x8xf32>
    "tpu.trace_stop"() : () -> ()
    %cst_17 = arith.constant dense<0xFF800000> : vector<1x8xf32>
    %45 = vector.multi_reduction <maximumf>, %44, %cst_17 [2] : vector<1x8x8xf32> to vector<1x8xf32>
    %46 = vector.shape_cast %45 : vector<1x8xf32> to vector<1x8x1xf32>
    %47 = vector.broadcast %46 : vector<1x8x1xf32> to vector<1x8x8xf32>
    %48 = arith.subf %44, %47 : vector<1x8x8xf32>
    %49 = math.exp %48 : vector<1x8x8xf32>
    %cst_18 = arith.constant dense<0.000000e+00> : vector<1x8xf32>
    %50 = vector.multi_reduction <add>, %49, %cst_18 [2] : vector<1x8x8xf32> to vector<1x8xf32>
    %51 = vector.shape_cast %50 : vector<1x8xf32> to vector<1x8x1xf32>
    %52 = tpu.reciprocal %51 {approx = true} : vector<1x8x1xf32> -> vector<1x8x1xf32>
    %53 = vector.broadcast %52 : vector<1x8x1xf32> to vector<1x8x8xf32>
    %54 = arith.mulf %49, %53 : vector<1x8x8xf32>
    %55 = arith.truncf %54 : vector<1x8x8xf32> to vector<1x8x8xbf16>
    %56 = vector.extract_strided_slice %19 {offsets = [0, 0, 8], sizes = [1, 8, 8], strides = [1, 1, 1]} : vector<1x8x32xbf16> to vector<1x8x8xbf16>
    "tpu.trace_start"() <{level = 10 : i32, message = "bqk,bkd->bqd"}> : () -> ()
    %cst_19 = arith.constant dense<0.000000e+00> : vector<1x8x8xf32>
    %57 = tpu.matmul %55, %56, %cst_19 {dimension_numbers = #tpu.dot_dimension_numbers<[2], [1], [1], [2], [0, 0, 0, 1, 1, 2], [0], [0]>} : vector<1x8x8xbf16>, vector<1x8x8xbf16>, vector<1x8x8xf32> -> vector<1x8x8xf32>
    "tpu.trace_stop"() : () -> ()
    %58 = vector.shape_cast %57 : vector<1x8x8xf32> to vector<8x8xf32>
    %59 = arith.truncf %58 : vector<8x8xf32> to vector<8x8xbf16>
    %c8 = arith.constant 8 : index
    %c0_20 = arith.constant 0 : index
    %60 = vector.load %arg5[%c8, %c0_20] : memref<32x32xbf16, #tpu.memory_space<vmem>>, vector<8x32xbf16>
    %cst_21 = arith.constant dense<0.000000e+00> : vector<8x32xf32>
    %61 = tpu.matmul %59, %60, %cst_21 {dimension_numbers = #tpu.dot_dimension_numbers<[1], [0], [0], [1], [0, 0, 1, 1], [], []>} : vector<8x8xbf16>, vector<8x32xbf16>, vector<8x32xf32> -> vector<8x32xf32>
    %62 = arith.addf %41, %61 : vector<8x32xf32>
    %63 = vector.extract_strided_slice %13 {offsets = [0, 0, 16], sizes = [1, 8, 8], strides = [1, 1, 1]} : vector<1x8x32xbf16> to vector<1x8x8xbf16>
    %64 = vector.extract_strided_slice %16 {offsets = [0, 0, 16], sizes = [1, 8, 8], strides = [1, 1, 1]} : vector<1x8x32xbf16> to vector<1x8x8xbf16>
    "tpu.trace_start"() <{level = 10 : i32, message = "bqd,bkd->bqk"}> : () -> ()
    %cst_22 = arith.constant dense<0.000000e+00> : vector<1x8x8xf32>
    %65 = tpu.matmul %63, %64, %cst_22 {dimension_numbers = #tpu.dot_dimension_numbers<[2], [2], [1], [1], [0, 0, 0, 1, 1, 1], [0], [0]>} : vector<1x8x8xbf16>, vector<1x8x8xbf16>, vector<1x8x8xf32> -> vector<1x8x8xf32>
    "tpu.trace_stop"() : () -> ()
    %cst_23 = arith.constant dense<0xFF800000> : vector<1x8xf32>
    %66 = vector.multi_reduction <maximumf>, %65, %cst_23 [2] : vector<1x8x8xf32> to vector<1x8xf32>
    %67 = vector.shape_cast %66 : vector<1x8xf32> to vector<1x8x1xf32>
    %68 = vector.broadcast %67 : vector<1x8x1xf32> to vector<1x8x8xf32>
    %69 = arith.subf %65, %68 : vector<1x8x8xf32>
    %70 = math.exp %69 : vector<1x8x8xf32>
    %cst_24 = arith.constant dense<0.000000e+00> : vector<1x8xf32>
    %71 = vector.multi_reduction <add>, %70, %cst_24 [2] : vector<1x8x8xf32> to vector<1x8xf32>
    %72 = vector.shape_cast %71 : vector<1x8xf32> to vector<1x8x1xf32>
    %73 = tpu.reciprocal %72 {approx = true} : vector<1x8x1xf32> -> vector<1x8x1xf32>
    %74 = vector.broadcast %73 : vector<1x8x1xf32> to vector<1x8x8xf32>
    %75 = arith.mulf %70, %74 : vector<1x8x8xf32>
    %76 = arith.truncf %75 : vector<1x8x8xf32> to vector<1x8x8xbf16>
    %77 = vector.extract_strided_slice %19 {offsets = [0, 0, 16], sizes = [1, 8, 8], strides = [1, 1, 1]} : vector<1x8x32xbf16> to vector<1x8x8xbf16>
    "tpu.trace_start"() <{level = 10 : i32, message = "bqk,bkd->bqd"}> : () -> ()
    %cst_25 = arith.constant dense<0.000000e+00> : vector<1x8x8xf32>
    %78 = tpu.matmul %76, %77, %cst_25 {dimension_numbers = #tpu.dot_dimension_numbers<[2], [1], [1], [2], [0, 0, 0, 1, 1, 2], [0], [0]>} : vector<1x8x8xbf16>, vector<1x8x8xbf16>, vector<1x8x8xf32> -> vector<1x8x8xf32>
    "tpu.trace_stop"() : () -> ()
    %79 = vector.shape_cast %78 : vector<1x8x8xf32> to vector<8x8xf32>
    %80 = arith.truncf %79 : vector<8x8xf32> to vector<8x8xbf16>
    %c16 = arith.constant 16 : index
    %c0_26 = arith.constant 0 : index
    %81 = vector.load %arg5[%c16, %c0_26] : memref<32x32xbf16, #tpu.memory_space<vmem>>, vector<8x32xbf16>
    %cst_27 = arith.constant dense<0.000000e+00> : vector<8x32xf32>
    %82 = tpu.matmul %80, %81, %cst_27 {dimension_numbers = #tpu.dot_dimension_numbers<[1], [0], [0], [1], [0, 0, 1, 1], [], []>} : vector<8x8xbf16>, vector<8x32xbf16>, vector<8x32xf32> -> vector<8x32xf32>
    %83 = arith.addf %62, %82 : vector<8x32xf32>
    %84 = vector.extract_strided_slice %13 {offsets = [0, 0, 24], sizes = [1, 8, 8], strides = [1, 1, 1]} : vector<1x8x32xbf16> to vector<1x8x8xbf16>
    %85 = vector.extract_strided_slice %16 {offsets = [0, 0, 24], sizes = [1, 8, 8], strides = [1, 1, 1]} : vector<1x8x32xbf16> to vector<1x8x8xbf16>
    "tpu.trace_start"() <{level = 10 : i32, message = "bqd,bkd->bqk"}> : () -> ()
    %cst_28 = arith.constant dense<0.000000e+00> : vector<1x8x8xf32>
    %86 = tpu.matmul %84, %85, %cst_28 {dimension_numbers = #tpu.dot_dimension_numbers<[2], [2], [1], [1], [0, 0, 0, 1, 1, 1], [0], [0]>} : vector<1x8x8xbf16>, vector<1x8x8xbf16>, vector<1x8x8xf32> -> vector<1x8x8xf32>
    "tpu.trace_stop"() : () -> ()
    %cst_29 = arith.constant dense<0xFF800000> : vector<1x8xf32>
    %87 = vector.multi_reduction <maximumf>, %86, %cst_29 [2] : vector<1x8x8xf32> to vector<1x8xf32>
    %88 = vector.shape_cast %87 : vector<1x8xf32> to vector<1x8x1xf32>
    %89 = vector.broadcast %88 : vector<1x8x1xf32> to vector<1x8x8xf32>
    %90 = arith.subf %86, %89 : vector<1x8x8xf32>
    %91 = math.exp %90 : vector<1x8x8xf32>
    %cst_30 = arith.constant dense<0.000000e+00> : vector<1x8xf32>
    %92 = vector.multi_reduction <add>, %91, %cst_30 [2] : vector<1x8x8xf32> to vector<1x8xf32>
    %93 = vector.shape_cast %92 : vector<1x8xf32> to vector<1x8x1xf32>
    %94 = tpu.reciprocal %93 {approx = true} : vector<1x8x1xf32> -> vector<1x8x1xf32>
    %95 = vector.broadcast %94 : vector<1x8x1xf32> to vector<1x8x8xf32>
    %96 = arith.mulf %91, %95 : vector<1x8x8xf32>
    %97 = arith.truncf %96 : vector<1x8x8xf32> to vector<1x8x8xbf16>
    %98 = vector.extract_strided_slice %19 {offsets = [0, 0, 24], sizes = [1, 8, 8], strides = [1, 1, 1]} : vector<1x8x32xbf16> to vector<1x8x8xbf16>
    "tpu.trace_start"() <{level = 10 : i32, message = "bqk,bkd->bqd"}> : () -> ()
    %cst_31 = arith.constant dense<0.000000e+00> : vector<1x8x8xf32>
    %99 = tpu.matmul %97, %98, %cst_31 {dimension_numbers = #tpu.dot_dimension_numbers<[2], [1], [1], [2], [0, 0, 0, 1, 1, 2], [0], [0]>} : vector<1x8x8xbf16>, vector<1x8x8xbf16>, vector<1x8x8xf32> -> vector<1x8x8xf32>
    "tpu.trace_stop"() : () -> ()
    %100 = vector.shape_cast %99 : vector<1x8x8xf32> to vector<8x8xf32>
    %101 = arith.truncf %100 : vector<8x8xf32> to vector<8x8xbf16>
    %c24 = arith.constant 24 : index
    %c0_32 = arith.constant 0 : index
    %102 = vector.load %arg5[%c24, %c0_32] : memref<32x32xbf16, #tpu.memory_space<vmem>>, vector<8x32xbf16>
    %cst_33 = arith.constant dense<0.000000e+00> : vector<8x32xf32>
    %103 = tpu.matmul %101, %102, %cst_33 {dimension_numbers = #tpu.dot_dimension_numbers<[1], [0], [0], [1], [0, 0, 1, 1], [], []>} : vector<8x8xbf16>, vector<8x32xbf16>, vector<8x32xf32> -> vector<8x32xf32>
    %104 = arith.addf %83, %103 : vector<8x32xf32>
    %c0_34 = arith.constant 0 : index
    %c0_35 = arith.constant 0 : index
    %105 = vector.load %arg6[%c0_34, %c0_35] : memref<1x32xf32, #tpu.memory_space<vmem>>, vector<1x32xf32>
    %106 = vector.broadcast %105 : vector<1x32xf32> to vector<8x32xf32>
    %107 = arith.addf %104, %106 : vector<8x32xf32>
    %108 = arith.addf %4, %107 : vector<8x32xf32>
    %c0_36 = arith.constant 0 : index
    %c0_37 = arith.constant 0 : index
    %109 = vector.load %arg7[%c0_36, %c0_37] : memref<1x32xf32, #tpu.memory_space<vmem>>, vector<1x32xf32>
    %c0_38 = arith.constant 0 : index
    %c0_39 = arith.constant 0 : index
    %110 = vector.load %arg8[%c0_38, %c0_39] : memref<1x32xf32, #tpu.memory_space<vmem>>, vector<1x32xf32>
    %cst_40 = arith.constant dense<0.000000e+00> : vector<8xf32>
    %111 = vector.multi_reduction <add>, %108, %cst_40 [1] : vector<8x32xf32> to vector<8xf32>
    %112 = vector.shape_cast %111 : vector<8xf32> to vector<8x1xf32>
    %cst_41 = arith.constant 3.125000e-02 : f32
    %113 = vector.broadcast %cst_41 : f32 to vector<8x1xf32>
    %114 = arith.mulf %112, %113 : vector<8x1xf32>
    %115 = vector.broadcast %114 : vector<8x1xf32> to vector<8x32xf32>
    %116 = arith.subf %108, %115 : vector<8x32xf32>
    %117 = arith.mulf %116, %116 : vector<8x32xf32>
    %cst_42 = arith.constant dense<0.000000e+00> : vector<8xf32>
    %118 = vector.multi_reduction <add>, %117, %cst_42 [1] : vector<8x32xf32> to vector<8xf32>
    %119 = vector.shape_cast %118 : vector<8xf32> to vector<8x1xf32>
    %cst_43 = arith.constant 3.125000e-02 : f32
    %120 = vector.broadcast %cst_43 : f32 to vector<8x1xf32>
    %121 = arith.mulf %119, %120 : vector<8x1xf32>
    %cst_44 = arith.constant 9.99999974E-6 : f32
    %122 = vector.broadcast %cst_44 : f32 to vector<8x1xf32>
    %123 = arith.addf %121, %122 : vector<8x1xf32>
    %124 = math.rsqrt %123 : vector<8x1xf32>
    %125 = vector.broadcast %124 : vector<8x1xf32> to vector<8x32xf32>
    %126 = arith.mulf %116, %125 : vector<8x32xf32>
    %127 = vector.broadcast %109 : vector<1x32xf32> to vector<8x32xf32>
    %128 = arith.mulf %126, %127 : vector<8x32xf32>
    %129 = vector.broadcast %110 : vector<1x32xf32> to vector<8x32xf32>
    %130 = arith.addf %128, %129 : vector<8x32xf32>
    %131 = arith.truncf %130 : vector<8x32xf32> to vector<8x32xbf16>
    %c0_45 = arith.constant 0 : index
    %c0_46 = arith.constant 0 : index
    %132 = vector.load %arg9[%c0_45, %c0_46] : memref<32x128xbf16, #tpu.memory_space<vmem>>, vector<32x128xbf16>
    %cst_47 = arith.constant dense<0.000000e+00> : vector<8x128xf32>
    %133 = tpu.matmul %131, %132, %cst_47 {dimension_numbers = #tpu.dot_dimension_numbers<[1], [0], [0], [1], [0, 0, 1, 1], [], []>} : vector<8x32xbf16>, vector<32x128xbf16>, vector<8x128xf32> -> vector<8x128xf32>
    %c0_48 = arith.constant 0 : index
    %c0_49 = arith.constant 0 : index
    %134 = vector.load %arg10[%c0_48, %c0_49] : memref<1x128xf32, #tpu.memory_space<vmem>>, vector<1x128xf32>
    %135 = vector.broadcast %134 : vector<1x128xf32> to vector<8x128xf32>
    %136 = arith.addf %133, %135 : vector<8x128xf32>
    %cst_50 = arith.constant 0.000000e+00 : f32
    %137 = vector.broadcast %cst_50 : f32 to vector<8x128xf32>
    %138 = arith.maximumf %136, %137 : vector<8x128xf32>
    %139 = arith.truncf %138 : vector<8x128xf32> to vector<8x128xbf16>
    %c0_51 = arith.constant 0 : index
    %c0_52 = arith.constant 0 : index
    %140 = vector.load %arg11[%c0_51, %c0_52] : memref<128x32xbf16, #tpu.memory_space<vmem>>, vector<128x32xbf16>
    %cst_53 = arith.constant dense<0.000000e+00> : vector<8x32xf32>
    %141 = tpu.matmul %139, %140, %cst_53 {dimension_numbers = #tpu.dot_dimension_numbers<[1], [0], [0], [1], [0, 0, 1, 1], [], []>} : vector<8x128xbf16>, vector<128x32xbf16>, vector<8x32xf32> -> vector<8x32xf32>
    %c0_54 = arith.constant 0 : index
    %c0_55 = arith.constant 0 : index
    %142 = vector.load %arg12[%c0_54, %c0_55] : memref<1x32xf32, #tpu.memory_space<vmem>>, vector<1x32xf32>
    %143 = vector.broadcast %142 : vector<1x32xf32> to vector<8x32xf32>
    %144 = arith.addf %141, %143 : vector<8x32xf32>
    %145 = arith.addf %130, %144 : vector<8x32xf32>
    %c0_56 = arith.constant 0 : index
    %c0_57 = arith.constant 0 : index
    %146 = vector.load %arg13[%c0_56, %c0_57] : memref<1x32xf32, #tpu.memory_space<vmem>>, vector<1x32xf32>
    %c0_58 = arith.constant 0 : index
    %c0_59 = arith.constant 0 : index
    %147 = vector.load %arg14[%c0_58, %c0_59] : memref<1x32xf32, #tpu.memory_space<vmem>>, vector<1x32xf32>
    %cst_60 = arith.constant dense<0.000000e+00> : vector<8xf32>
    %148 = vector.multi_reduction <add>, %145, %cst_60 [1] : vector<8x32xf32> to vector<8xf32>
    %149 = vector.shape_cast %148 : vector<8xf32> to vector<8x1xf32>
    %cst_61 = arith.constant 3.125000e-02 : f32
    %150 = vector.broadcast %cst_61 : f32 to vector<8x1xf32>
    %151 = arith.mulf %149, %150 : vector<8x1xf32>
    %152 = vector.broadcast %151 : vector<8x1xf32> to vector<8x32xf32>
    %153 = arith.subf %145, %152 : vector<8x32xf32>
    %154 = arith.mulf %153, %153 : vector<8x32xf32>
    %cst_62 = arith.constant dense<0.000000e+00> : vector<8xf32>
    %155 = vector.multi_reduction <add>, %154, %cst_62 [1] : vector<8x32xf32> to vector<8xf32>
    %156 = vector.shape_cast %155 : vector<8xf32> to vector<8x1xf32>
    %cst_63 = arith.constant 3.125000e-02 : f32
    %157 = vector.broadcast %cst_63 : f32 to vector<8x1xf32>
    %158 = arith.mulf %156, %157 : vector<8x1xf32>
    %cst_64 = arith.constant 9.99999974E-6 : f32
    %159 = vector.broadcast %cst_64 : f32 to vector<8x1xf32>
    %160 = arith.addf %158, %159 : vector<8x1xf32>
    %161 = math.rsqrt %160 : vector<8x1xf32>
    %162 = vector.broadcast %161 : vector<8x1xf32> to vector<8x32xf32>
    %163 = arith.mulf %153, %162 : vector<8x32xf32>
    %164 = vector.broadcast %146 : vector<1x32xf32> to vector<8x32xf32>
    %165 = arith.mulf %163, %164 : vector<8x32xf32>
    %166 = vector.broadcast %147 : vector<1x32xf32> to vector<8x32xf32>
    %167 = arith.addf %165, %166 : vector<8x32xf32>
    %168 = vector.shape_cast %167 : vector<8x32xf32> to vector<1x8x32xf32>
    %c0_65 = arith.constant 0 : index
    %c0_66 = arith.constant 0 : index
    %c0_67 = arith.constant 0 : index
    %169 = vector.load %arg15[%c0_65, %c0_66, %c0_67] : memref<1x8x32xf32, #tpu.memory_space<vmem>>, vector<1x8x32xf32>
    tpu.vector_store %arg15[%c0_65, %c0_66, %c0_67], %168 {strides = array<i32>} : memref<1x8x32xf32, #tpu.memory_space<vmem>>, vector<1x8x32xf32>,
    return
  }
  func.func @transform_0(%arg0: i32) -> (i32, i32, i32) {
    %c0_i32 = arith.constant 0 : i32
    %c0_i32_0 = arith.constant 0 : i32
    %c0_i32_1 = arith.constant 0 : i32
    return %arg0, %c0_i32, %c0_i32_0 : i32, i32, i32
  }
  func.func @transform_1(%arg0: i32) -> (i32, i32) {
    %c0_i32 = arith.constant 0 : i32
    %c0_i32_0 = arith.constant 0 : i32
    %c0_i32_1 = arith.constant 0 : i32
    return %c0_i32, %c0_i32_0 : i32, i32
  }
  func.func @transform_2(%arg0: i32) -> (i32, i32) {
    %c0_i32 = arith.constant 0 : i32
    %c0_i32_0 = arith.constant 0 : i32
    %c0_i32_1 = arith.constant 0 : i32
    return %c0_i32, %c0_i32_0 : i32, i32
  }
  func.func @transform_3(%arg0: i32) -> (i32, i32) {
    %c0_i32 = arith.constant 0 : i32
    %c0_i32_0 = arith.constant 0 : i32
    %c0_i32_1 = arith.constant 0 : i32
    return %c0_i32, %c0_i32_0 : i32, i32
  }
  func.func @transform_4(%arg0: i32) -> (i32, i32) {
    %c0_i32 = arith.constant 0 : i32
    %c0_i32_0 = arith.constant 0 : i32
    %c0_i32_1 = arith.constant 0 : i32
    return %c0_i32, %c0_i32_0 : i32, i32
  }
  func.func @transform_5(%arg0: i32) -> (i32, i32) {
    %c0_i32 = arith.constant 0 : i32
    %c0_i32_0 = arith.constant 0 : i32
    %c0_i32_1 = arith.constant 0 : i32
    return %c0_i32, %c0_i32_0 : i32, i32
  }
  func.func @transform_6(%arg0: i32) -> (i32, i32) {
    %c0_i32 = arith.constant 0 : i32
    %c0_i32_0 = arith.constant 0 : i32
    %c0_i32_1 = arith.constant 0 : i32
    return %c0_i32, %c0_i32_0 : i32, i32
  }
  func.func @transform_7(%arg0: i32) -> (i32, i32) {
    %c0_i32 = arith.constant 0 : i32
    %c0_i32_0 = arith.constant 0 : i32
    %c0_i32_1 = arith.constant 0 : i32
    return %c0_i32, %c0_i32_0 : i32, i32
  }
  func.func @transform_8(%arg0: i32) -> (i32, i32) {
    %c0_i32 = arith.constant 0 : i32
    %c0_i32_0 = arith.constant 0 : i32
    %c0_i32_1 = arith.constant 0 : i32
    return %c0_i32, %c0_i32_0 : i32, i32
  }
  func.func @transform_9(%arg0: i32) -> (i32, i32) {
    %c0_i32 = arith.constant 0 : i32
    %c0_i32_0 = arith.constant 0 : i32
    %c0_i32_1 = arith.constant 0 : i32
    return %c0_i32, %c0_i32_0 : i32, i32
  }
  func.func @transform_10(%arg0: i32) -> (i32, i32) {
    %c0_i32 = arith.constant 0 : i32
    %c0_i32_0 = arith.constant 0 : i32
    %c0_i32_1 = arith.constant 0 : i32
    return %c0_i32, %c0_i32_0 : i32, i32
  }
  func.func @transform_11(%arg0: i32) -> (i32, i32) {
    %c0_i32 = arith.constant 0 : i32
    %c0_i32_0 = arith.constant 0 : i32
    %c0_i32_1 = arith.constant 0 : i32
    return %c0_i32, %c0_i32_0 : i32, i32
  }
  func.func @transform_12(%arg0: i32) -> (i32, i32) {
    %c0_i32 = arith.constant 0 : i32
    %c0_i32_0 = arith.constant 0 : i32
    %c0_i32_1 = arith.constant 0 : i32
    return %c0_i32, %c0_i32_0 : i32, i32
  }
  func.func @transform_13(%arg0: i32) -> (i32, i32) {
    %c0_i32 = arith.constant 0 : i32
    %c0_i32_0 = arith.constant 0 : i32
    %c0_i32_1 = arith.constant 0 : i32
    return %c0_i32, %c0_i32_0 : i32, i32
  }
  func.func @transform_14(%arg0: i32) -> (i32, i32, i32) {
    %c0_i32 = arith.constant 0 : i32
    %c0_i32_0 = arith.constant 0 : i32
    %c0_i32_1 = arith.constant 0 : i32
    return %arg0, %c0_i32, %c0_i32_0 : i32, i32, i32
  }
}

</mosaic_0001>

<llo_original>
// kernel: tpu_custom_call.1
$region0: #{tpu_custom_call.1}
  #allocation0 [shape = 'u32[]', space=smem, size = 0x4, offset = 0x4, fixed_abs, tag = 'smem constant byte address 0x4 - core index']
  #allocation1 [shape = 'u32[144,128]{1,0:T(1,128)}', space=vmem, size = 0x12000, scoped, tag = 'internal scratch']
  %s0 = inlined_call_operand.vmem [shape: f32[2,8,32], index: 0, kind: input, shape index: {}]
  %s1 = inlined_call_operand.vmem [shape: f32[8,32], index: 1, kind: input, shape index: {}]
  %s2 = inlined_call_operand.vmem [shape: bf16[32,96], index: 2, kind: input, shape index: {}]
  %s3 = inlined_call_operand.vmem [shape: f32[1,96], index: 3, kind: input, shape index: {}]
  %s4 = inlined_call_operand.vmem [shape: bf16[32,32], index: 4, kind: input, shape index: {}]
  %s5 = inlined_call_operand.vmem [shape: f32[1,32], index: 5, kind: input, shape index: {}]
  %s6 = inlined_call_operand.vmem [shape: f32[1,32], index: 6, kind: input, shape index: {}]
  %s7 = inlined_call_operand.vmem [shape: f32[1,32], index: 7, kind: input, shape index: {}]
  %s8 = inlined_call_operand.vmem [shape: bf16[32,128], index: 8, kind: input, shape index: {}]
  %s9 = inlined_call_operand.vmem [shape: f32[1,128], index: 9, kind: input, shape index: {}]
  %s10 = inlined_call_operand.vmem [shape: bf16[128,32], index: 10, kind: input, shape index: {}]
  %s11 = inlined_call_operand.vmem [shape: f32[1,32], index: 11, kind: input, shape index: {}]
  %s12 = inlined_call_operand.vmem [shape: f32[1,32], index: 12, kind: input, shape index: {}]
  %s13 = inlined_call_operand.vmem [shape: f32[1,32], index: 13, kind: input, shape index: {}]
  %s14 = inlined_call_operand.hbm [shape: f32[2,8,32], index: 14, kind: output, shape index: {}]
  %s15 = sld [smem:[#allocation0]]
  $region89: #{tpu_custom_call.1} parent=0
    _
  %s17 = ssub.s32 1, %s15
  %s18 = scalar_select 0, %s17, %s15
  $region1: #{tpu_custom_call.1} parent=0
    #allocation2 [shape = 'u8[8192]{0}', space=vmem, size = 0x2000, scoped, tag = 'output window, operand 0']
    #allocation3 [shape = 's32[2]{0}', space=sflag, size = 0x8, scoped, tag = 'scoped memory for tpu_custom_call.1']
    %19 = vsyncpa [#allocation3], 0
    %s20 = scalar_lea.sflag [#allocation3], 1
    %21 = vsyncpa %s20, 0
    loop: start=0, step=1, limit=4
    $region2: #{tpu_custom_call.1} parent=1 // loop_pre_header
      _
    $region3: #{tpu_custom_call.1} parent=1 // loop_header
      %s23 = sphi 0, %s27
      %p24 = scmp.ge.s32.totalorder %s23, 4
      %s33 = sphi 0, %s35
      %s36 = sphi 0, %s33
      %s37 = sphi 0, %s36
      %s53 = sphi 0, %s37
      %s57 = sphi 0, %s57
      %s59 = sphi 0, %s57
      %s60 = sphi 0, %s59
      %s74 = sphi 0, %s60
      %s78 = sphi 0, %s78
      %s80 = sphi 0, %s78
      %s81 = sphi 0, %s80
      %s95 = sphi 0, %s81
      %s99 = sphi 0, %s99
      %s101 = sphi 0, %s99
      %s102 = sphi 0, %s101
      %s116 = sphi 0, %s102
      %s120 = sphi 0, %s120
      %s122 = sphi 0, %s120
      %s123 = sphi 0, %s122
      %s137 = sphi 0, %s123
      %s141 = sphi 0, %s141
      %s143 = sphi 0, %s141
      %s144 = sphi 0, %s143
      %s158 = sphi 0, %s144
      %s162 = sphi 0, %s162
      %s164 = sphi 0, %s162
      %s165 = sphi 0, %s164
      %s179 = sphi 0, %s165
      %s183 = sphi 0, %s183
      %s185 = sphi 0, %s183
      %s186 = sphi 0, %s185
      %s200 = sphi 0, %s186
      %s204 = sphi 0, %s204
      %s206 = sphi 0, %s204
      %s207 = sphi 0, %s206
      %s221 = sphi 0, %s207
      %s225 = sphi 0, %s225
      %s227 = sphi 0, %s225
      %s228 = sphi 0, %s227
      %s242 = sphi 0, %s228
      %s246 = sphi 0, %s246
      %s248 = sphi 0, %s246
      %s249 = sphi 0, %s248
      %s263 = sphi 0, %s249
      %s267 = sphi 0, %s267
      %s269 = sphi 0, %s267
      %s270 = sphi 0, %s269
      %s284 = sphi 0, %s270
      %s288 = sphi 0, %s288
      %s290 = sphi 0, %s288
      %s291 = sphi 0, %s290
      %s305 = sphi 0, %s291
      %s309 = sphi 0, %s309
      %s311 = sphi 0, %s309
      %s312 = sphi 0, %s311
      %s326 = sphi 0, %s312
      %s332 = sphi 0, %s334
      %s335 = sphi 0, %s332
      %s336 = sphi 0, %s335
      %s352 = sphi 0, %s336
    $region4: #{tpu_custom_call.1} parent=1 // loop_header_branch
      %26 = sbr.rel (%p24) target = $region8
    $region5: #{tpu_custom_call.1} parent=1 // loop_body
      %s28 = ssub.s32 %s23, 1
      %s29 = ssub.s32 %s23, 2
      %s30 = sadd.s32 %s23, 1
      %s31 = ssub.s32 %s23, %s30
      %p32 = scmp.eq.s32.totalorder %s31, 0
      %s34 = sadd.s32 %s33, 1
      %s35 = scalar_select %p32, %s33, %s34
      %p38 = pneg %p32
      %p39 = scmp.eq.s32.totalorder %s23, 1
      %p40 = por %p38, %p39
      %p41 = scmp.ne.s32.totalorder %s33, %s36
      %p42 = scmp.eq.s32.totalorder %s23, 0
      %p43 = por %p41, %p42
      %p44 = scmp.ne.s32.totalorder %s33, %s36
      %p45 = scmp.eq.s32.totalorder %s28, 1
      %p46 = por %p44, %p45
      %p47 = scmp.ne.s32.totalorder %s36, %s37
      %p48 = scmp.eq.s32.totalorder %s28, 0
      %p49 = por %p47, %p48
      %p50 = scmp.ne.s32.totalorder %s36, %s37
      %p51 = scmp.eq.s32.totalorder %s29, 1
      %p52 = por %p50, %p51
      %p54 = scmp.ne.s32.totalorder %s37, %s53
      %p55 = scmp.eq.s32.totalorder %s29, 0
      %p56 = por %p54, %p55
      %s58 = sadd.s32 %s57, 1
      %p61 = scmp.eq.s32.totalorder %s23, 1
      %p62 = scmp.ne.s32.totalorder %s57, %s59
      %p63 = scmp.eq.s32.totalorder %s23, 0
      %p64 = por %p62, %p63
      %p65 = scmp.ne.s32.totalorder %s57, %s59
      %p66 = scmp.eq.s32.totalorder %s28, 1
      %p67 = por %p65, %p66
      %p68 = scmp.ne.s32.totalorder %s59, %s60
      %p69 = scmp.eq.s32.totalorder %s28, 0
      %p70 = por %p68, %p69
      %p71 = scmp.ne.s32.totalorder %s59, %s60
      %p72 = scmp.eq.s32.totalorder %s29, 1
      %p73 = por %p71, %p72
      %p75 = scmp.ne.s32.totalorder %s60, %s74
      %p76 = scmp.eq.s32.totalorder %s29, 0
      %p77 = por %p75, %p76
      %s79 = sadd.s32 %s78, 1
      %p82 = scmp.eq.s32.totalorder %s23, 1
      %p83 = scmp.ne.s32.totalorder %s78, %s80
      %p84 = scmp.eq.s32.totalorder %s23, 0
      %p85 = por %p83, %p84
      %p86 = scmp.ne.s32.totalorder %s78, %s80
      %p87 = scmp.eq.s32.totalorder %s28, 1
      %p88 = por %p86, %p87
      %p89 = scmp.ne.s32.totalorder %s80, %s81
      %p90 = scmp.eq.s32.totalorder %s28, 0
      %p91 = por %p89, %p90
      %p92 = scmp.ne.s32.totalorder %s80, %s81
      %p93 = scmp.eq.s32.totalorder %s29, 1
      %p94 = por %p92, %p93
      %p96 = scmp.ne.s32.totalorder %s81, %s95
      %p97 = scmp.eq.s32.totalorder %s29, 0
      %p98 = por %p96, %p97
      %s100 = sadd.s32 %s99, 1
      %p103 = scmp.eq.s32.totalorder %s23, 1
      %p104 = scmp.ne.s32.totalorder %s99, %s101
      %p105 = scmp.eq.s32.totalorder %s23, 0
      %p106 = por %p104, %p105
      %p107 = scmp.ne.s32.totalorder %s99, %s101
      %p108 = scmp.eq.s32.totalorder %s28, 1
      %p109 = por %p107, %p108
      %p110 = scmp.ne.s32.totalorder %s101, %s102
      %p111 = scmp.eq.s32.totalorder %s28, 0
      %p112 = por %p110, %p111
      %p113 = scmp.ne.s32.totalorder %s101, %s102
      %p114 = scmp.eq.s32.totalorder %s29, 1
      %p115 = por %p113, %p114
      %p117 = scmp.ne.s32.totalorder %s102, %s116
      %p118 = scmp.eq.s32.totalorder %s29, 0
      %p119 = por %p117, %p118
      %s121 = sadd.s32 %s120, 1
      %p124 = scmp.eq.s32.totalorder %s23, 1
      %p125 = scmp.ne.s32.totalorder %s120, %s122
      %p126 = scmp.eq.s32.totalorder %s23, 0
      %p127 = por %p125, %p126
      %p128 = scmp.ne.s32.totalorder %s120, %s122
      %p129 = scmp.eq.s32.totalorder %s28, 1
      %p130 = por %p128, %p129
      %p131 = scmp.ne.s32.totalorder %s122, %s123
      %p132 = scmp.eq.s32.totalorder %s28, 0
      %p133 = por %p131, %p132
      %p134 = scmp.ne.s32.totalorder %s122, %s123
      %p135 = scmp.eq.s32.totalorder %s29, 1
      %p136 = por %p134, %p135
      %p138 = scmp.ne.s32.totalorder %s123, %s137
      %p139 = scmp.eq.s32.totalorder %s29, 0
      %p140 = por %p138, %p139
      %s142 = sadd.s32 %s141, 1
      %p145 = scmp.eq.s32.totalorder %s23, 1
      %p146 = scmp.ne.s32.totalorder %s141, %s143
      %p147 = scmp.eq.s32.totalorder %s23, 0
      %p148 = por %p146, %p147
      %p149 = scmp.ne.s32.totalorder %s141, %s143
      %p150 = scmp.eq.s32.totalorder %s28, 1
      %p151 = por %p149, %p150
      %p152 = scmp.ne.s32.totalorder %s143, %s144
      %p153 = scmp.eq.s32.totalorder %s28, 0
      %p154 = por %p152, %p153
      %p155 = scmp.ne.s32.totalorder %s143, %s144
      %p156 = scmp.eq.s32.totalorder %s29, 1
      %p157 = por %p155, %p156
      %p159 = scmp.ne.s32.totalorder %s144, %s158
      %p160 = scmp.eq.s32.totalorder %s29, 0
      %p161 = por %p159, %p160
      %s163 = sadd.s32 %s162, 1
      %p166 = scmp.eq.s32.totalorder %s23, 1
      %p167 = scmp.ne.s32.totalorder %s162, %s164
      %p168 = scmp.eq.s32.totalorder %s23, 0
      %p169 = por %p167, %p168
      %p170 = scmp.ne.s32.totalorder %s162, %s164
      %p171 = scmp.eq.s32.totalorder %s28, 1
      %p172 = por %p170, %p171
      %p173 = scmp.ne.s32.totalorder %s164, %s165
      %p174 = scmp.eq.s32.totalorder %s28, 0
      %p175 = por %p173, %p174
      %p176 = scmp.ne.s32.totalorder %s164, %s165
      %p177 = scmp.eq.s32.totalorder %s29, 1
      %p178 = por %p176, %p177
      %p180 = scmp.ne.s32.totalorder %s165, %s179
      %p181 = scmp.eq.s32.totalorder %s29, 0
      %p182 = por %p180, %p181
      %s184 = sadd.s32 %s183, 1
      %p187 = scmp.eq.s32.totalorder %s23, 1
      %p188 = scmp.ne.s32.totalorder %s183, %s185
      %p189 = scmp.eq.s32.totalorder %s23, 0
      %p190 = por %p188, %p189
      %p191 = scmp.ne.s32.totalorder %s183, %s185
      %p192 = scmp.eq.s32.totalorder %s28, 1
      %p193 = por %p191, %p192
      %p194 = scmp.ne.s32.totalorder %s185, %s186
      %p195 = scmp.eq.s32.totalorder %s28, 0
      %p196 = por %p194, %p195
      %p197 = scmp.ne.s32.totalorder %s185, %s186
      %p198 = scmp.eq.s32.totalorder %s29, 1
      %p199 = por %p197, %p198
      %p201 = scmp.ne.s32.totalorder %s186, %s200
      %p202 = scmp.eq.s32.totalorder %s29, 0
      %p203 = por %p201, %p202
      %s205 = sadd.s32 %s204, 1
      %p208 = scmp.eq.s32.totalorder %s23, 1
      %p209 = scmp.ne.s32.totalorder %s204, %s206
      %p210 = scmp.eq.s32.totalorder %s23, 0
      %p211 = por %p209, %p210
      %p212 = scmp.ne.s32.totalorder %s204, %s206
      %p213 = scmp.eq.s32.totalorder %s28, 1
      %p214 = por %p212, %p213
      %p215 = scmp.ne.s32.totalorder %s206, %s207
      %p216 = scmp.eq.s32.totalorder %s28, 0
      %p217 = por %p215, %p216
      %p218 = scmp.ne.s32.totalorder %s206, %s207
      %p219 = scmp.eq.s32.totalorder %s29, 1
      %p220 = por %p218, %p219
      %p222 = scmp.ne.s32.totalorder %s207, %s221
      %p223 = scmp.eq.s32.totalorder %s29, 0
      %p224 = por %p222, %p223
      %s226 = sadd.s32 %s225, 1
      %p229 = scmp.eq.s32.totalorder %s23, 1
      %p230 = scmp.ne.s32.totalorder %s225, %s227
      %p231 = scmp.eq.s32.totalorder %s23, 0
      %p232 = por %p230, %p231
      %p233 = scmp.ne.s32.totalorder %s225, %s227
      %p234 = scmp.eq.s32.totalorder %s28, 1
      %p235 = por %p233, %p234
      %p236 = scmp.ne.s32.totalorder %s227, %s228
      %p237 = scmp.eq.s32.totalorder %s28, 0
      %p238 = por %p236, %p237
      %p239 = scmp.ne.s32.totalorder %s227, %s228
      %p240 = scmp.eq.s32.totalorder %s29, 1
      %p241 = por %p239, %p240
      %p243 = scmp.ne.s32.totalorder %s228, %s242
      %p244 = scmp.eq.s32.totalorder %s29, 0
      %p245 = por %p243, %p244
      %s247 = sadd.s32 %s246, 1
      %p250 = scmp.eq.s32.totalorder %s23, 1
      %p251 = scmp.ne.s32.totalorder %s246, %s248
      %p252 = scmp.eq.s32.totalorder %s23, 0
      %p253 = por %p251, %p252
      %p254 = scmp.ne.s32.totalorder %s246, %s248
      %p255 = scmp.eq.s32.totalorder %s28, 1
      %p256 = por %p254, %p255
      %p257 = scmp.ne.s32.totalorder %s248, %s249
      %p258 = scmp.eq.s32.totalorder %s28, 0
      %p259 = por %p257, %p258
      %p260 = scmp.ne.s32.totalorder %s248, %s249
      %p261 = scmp.eq.s32.totalorder %s29, 1
      %p262 = por %p260, %p261
      %p264 = scmp.ne.s32.totalorder %s249, %s263
      %p265 = scmp.eq.s32.totalorder %s29, 0
      %p266 = por %p264, %p265
      %s268 = sadd.s32 %s267, 1
      %p271 = scmp.eq.s32.totalorder %s23, 1
      %p272 = scmp.ne.s32.totalorder %s267, %s269
      %p273 = scmp.eq.s32.totalorder %s23, 0
      %p274 = por %p272, %p273
      %p275 = scmp.ne.s32.totalorder %s267, %s269
      %p276 = scmp.eq.s32.totalorder %s28, 1
      %p277 = por %p275, %p276
      %p278 = scmp.ne.s32.totalorder %s269, %s270
      %p279 = scmp.eq.s32.totalorder %s28, 0
      %p280 = por %p278, %p279
      %p281 = scmp.ne.s32.totalorder %s269, %s270
      %p282 = scmp.eq.s32.totalorder %s29, 1
      %p283 = por %p281, %p282
      %p285 = scmp.ne.s32.totalorder %s270, %s284
      %p286 = scmp.eq.s32.totalorder %s29, 0
      %p287 = por %p285, %p286
      %s289 = sadd.s32 %s288, 1
      %p292 = scmp.eq.s32.totalorder %s23, 1
      %p293 = scmp.ne.s32.totalorder %s288, %s290
      %p294 = scmp.eq.s32.totalorder %s23, 0
      %p295 = por %p293, %p294
      %p296 = scmp.ne.s32.totalorder %s288, %s290
      %p297 = scmp.eq.s32.totalorder %s28, 1
      %p298 = por %p296, %p297
      %p299 = scmp.ne.s32.totalorder %s290, %s291
      %p300 = scmp.eq.s32.totalorder %s28, 0
      %p301 = por %p299, %p300
      %p302 = scmp.ne.s32.totalorder %s290, %s291
      %p303 = scmp.eq.s32.totalorder %s29, 1
      %p304 = por %p302, %p303
      %p306 = scmp.ne.s32.totalorder %s291, %s305
      %p307 = scmp.eq.s32.totalorder %s29, 0
      %p308 = por %p306, %p307
      %s310 = sadd.s32 %s309, 1
      %p313 = scmp.eq.s32.totalorder %s23, 1
      %p314 = scmp.ne.s32.totalorder %s309, %s311
      %p315 = scmp.eq.s32.totalorder %s23, 0
      %p316 = por %p314, %p315
      %p317 = scmp.ne.s32.totalorder %s309, %s311
      %p318 = scmp.eq.s32.totalorder %s28, 1
      %p319 = por %p317, %p318
      %p320 = scmp.ne.s32.totalorder %s311, %s312
      %p321 = scmp.eq.s32.totalorder %s28, 0
      %p322 = por %p320, %p321
      %p323 = scmp.ne.s32.totalorder %s311, %s312
      %p324 = scmp.eq.s32.totalorder %s29, 1
      %p325 = por %p323, %p324
      %p327 = scmp.ne.s32.totalorder %s312, %s326
      %p328 = scmp.eq.s32.totalorder %s29, 0
      %p329 = por %p327, %p328
      %s330 = ssub.s32 %s23, %s30
      %p331 = scmp.eq.s32.totalorder %s330, 0
      %s333 = sadd.s32 %s332, 1
      %s334 = scalar_select %p331, %s332, %s333
      %p337 = pneg %p331
      %p338 = scmp.eq.s32.totalorder %s23, 1
      %p339 = por %p337, %p338
      %p340 = scmp.ne.s32.totalorder %s332, %s335
      %p341 = scmp.eq.s32.totalorder %s23, 0
      %p342 = por %p340, %p341
      %p343 = scmp.ne.s32.totalorder %s332, %s335
      %p344 = scmp.eq.s32.totalorder %s28, 1
      %p345 = por %p343, %p344
      %p346 = scmp.ne.s32.totalorder %s335, %s336
      %p347 = scmp.eq.s32.totalorder %s28, 0
      %p348 = por %p346, %p347
      %p349 = scmp.ne.s32.totalorder %s335, %s336
      %p350 = scmp.eq.s32.totalorder %s29, 1
      %p351 = por %p349, %p350
      %p353 = scmp.ne.s32.totalorder %s336, %s352
      %p354 = scmp.eq.s32.totalorder %s29, 0
      %p355 = por %p353, %p354
      %p356 = scmp.le.s32.totalorder 1, %s23
      %p357 = scmp.lt.s32.totalorder %s23, 3
      %p358 = pnand %p356, %p357
      %p359 = pneg %p358
      // Predicated region
      $region9: #{tpu_custom_call.1} parent=5 // pred_check
        _
      $region10: #{tpu_custom_call.1} parent=5 // pred_check_branch
        %361 = sbr.rel (%p358) target = $region12
      $region11: #{tpu_custom_call.1} parent=5 // pred_region
        %s362 = ssub.s32 %s23, 1
        // Predicated region
        $region13: #{tpu_custom_call.1} parent=11 // pred_check
          %p363 = pneg %p70
        $region14: #{tpu_custom_call.1} parent=11 // pred_check_branch
          %365 = sbr.rel (%p363) target = $region16
        $region15: #{tpu_custom_call.1} parent=11 // pred_region
          _
        $region16: #{tpu_custom_call.1} parent=11 // pred_fallthru
          _
        // Predicated region
        $region17: #{tpu_custom_call.1} parent=11 // pred_check
          %p366 = pneg %p91
        $region18: #{tpu_custom_call.1} parent=11 // pred_check_branch
          %368 = sbr.rel (%p366) target = $region20
        $region19: #{tpu_custom_call.1} parent=11 // pred_region
          _
        $region20: #{tpu_custom_call.1} parent=11 // pred_fallthru
          _
        // Predicated region
        $region21: #{tpu_custom_call.1} parent=11 // pred_check
          %p369 = pneg %p112
        $region22: #{tpu_custom_call.1} parent=11 // pred_check_branch
          %371 = sbr.rel (%p369) target = $region24
        $region23: #{tpu_custom_call.1} parent=11 // pred_region
          _
        $region24: #{tpu_custom_call.1} parent=11 // pred_fallthru
          _
        // Predicated region
        $region25: #{tpu_custom_call.1} parent=11 // pred_check
          %p372 = pneg %p133
        $region26: #{tpu_custom_call.1} parent=11 // pred_check_branch
          %374 = sbr.rel (%p372) target = $region28
        $region27: #{tpu_custom_call.1} parent=11 // pred_region
          _
        $region28: #{tpu_custom_call.1} parent=11 // pred_fallthru
          _
        // Predicated region
        $region29: #{tpu_custom_call.1} parent=11 // pred_check
          %p375 = pneg %p154
        $region30: #{tpu_custom_call.1} parent=11 // pred_check_branch
          %377 = sbr.rel (%p375) target = $region32
        $region31: #{tpu_custom_call.1} parent=11 // pred_region
          _
        $region32: #{tpu_custom_call.1} parent=11 // pred_fallthru
          _
        // Predicated region
        $region33: #{tpu_custom_call.1} parent=11 // pred_check
          %p378 = pneg %p175
        $region34: #{tpu_custom_call.1} parent=11 // pred_check_branch
          %380 = sbr.rel (%p378) target = $region36
        $region35: #{tpu_custom_call.1} parent=11 // pred_region
          _
        $region36: #{tpu_custom_call.1} parent=11 // pred_fallthru
          _
        // Predicated region
        $region37: #{tpu_custom_call.1} parent=11 // pred_check
          %p381 = pneg %p196
        $region38: #{tpu_custom_call.1} parent=11 // pred_check_branch
          %383 = sbr.rel (%p381) target = $region40
        $region39: #{tpu_custom_call.1} parent=11 // pred_region
          _
        $region40: #{tpu_custom_call.1} parent=11 // pred_fallthru
          _
        // Predicated region
        $region41: #{tpu_custom_call.1} parent=11 // pred_check
          %p384 = pneg %p217
        $region42: #{tpu_custom_call.1} parent=11 // pred_check_branch
          %386 = sbr.rel (%p384) target = $region44
        $region43: #{tpu_custom_call.1} parent=11 // pred_region
          _
        $region44: #{tpu_custom_call.1} parent=11 // pred_fallthru
          _
        // Predicated region
        $region45: #{tpu_custom_call.1} parent=11 // pred_check
          %p387 = pneg %p238
        $region46: #{tpu_custom_call.1} parent=11 // pred_check_branch
          %389 = sbr.rel (%p387) target = $region48
        $region47: #{tpu_custom_call.1} parent=11 // pred_region
          _
        $region48: #{tpu_custom_call.1} parent=11 // pred_fallthru
          _
        // Predicated region
        $region49: #{tpu_custom_call.1} parent=11 // pred_check
          %p390 = pneg %p259
        $region50: #{tpu_custom_call.1} parent=11 // pred_check_branch
          %392 = sbr.rel (%p390) target = $region52
        $region51: #{tpu_custom_call.1} parent=11 // pred_region
          _
        $region52: #{tpu_custom_call.1} parent=11 // pred_fallthru
          _
        // Predicated region
        $region53: #{tpu_custom_call.1} parent=11 // pred_check
          %p393 = pneg %p280
        $region54: #{tpu_custom_call.1} parent=11 // pred_check_branch
          %395 = sbr.rel (%p393) target = $region56
        $region55: #{tpu_custom_call.1} parent=11 // pred_region
          _
        $region56: #{tpu_custom_call.1} parent=11 // pred_fallthru
          _
        // Predicated region
        $region57: #{tpu_custom_call.1} parent=11 // pred_check
          %p396 = pneg %p301
        $region58: #{tpu_custom_call.1} parent=11 // pred_check_branch
          %398 = sbr.rel (%p396) target = $region60
        $region59: #{tpu_custom_call.1} parent=11 // pred_region
          _
        $region60: #{tpu_custom_call.1} parent=11 // pred_fallthru
          _
        // Predicated region
        $region61: #{tpu_custom_call.1} parent=11 // pred_check
          %p399 = pneg %p322
        $region62: #{tpu_custom_call.1} parent=11 // pred_check_branch
          %401 = sbr.rel (%p399) target = $region64
        $region63: #{tpu_custom_call.1} parent=11 // pred_region
          _
        $region64: #{tpu_custom_call.1} parent=11 // pred_fallthru
          _
      $region12: #{tpu_custom_call.1} parent=5 // pred_fallthru
        _
      %p402 = scmp.lt.s32.totalorder %s23, 2
      // Predicated region
      $region65: #{tpu_custom_call.1} parent=5 // pred_check
        %p403 = pneg %p402
      $region66: #{tpu_custom_call.1} parent=5 // pred_check_branch
        %405 = sbr.rel (%p403) target = $region68
      $region67: #{tpu_custom_call.1} parent=5 // pred_region
        // Predicated region
        $region69: #{tpu_custom_call.1} parent=67 // pred_check
          %p406 = pneg %p43
        $region70: #{tpu_custom_call.1} parent=67 // pred_check_branch
          %408 = sbr.rel (%p406) target = $region72
        $region71: #{tpu_custom_call.1} parent=67 // pred_region
          %p409 = scmp.lt.s32.totalorder %s23, 1
          %s410 = scalar_select %p409, %s23, 1
          %s411 = smul.addr %s410, 8
          %s412 = scalar_lea.vmem %s0, %s411
        $region72: #{tpu_custom_call.1} parent=67 // pred_fallthru
          _
      $region68: #{tpu_custom_call.1} parent=5 // pred_fallthru
        _
      %p413 = scmp.le.s32.totalorder 1, %s23
      %p414 = scmp.lt.s32.totalorder %s23, 3
      %p415 = pnand %p413, %p414
      %p416 = pneg %p415
      // Predicated region
      $region73: #{tpu_custom_call.1} parent=5 // pred_check
        _
      $region74: #{tpu_custom_call.1} parent=5 // pred_check_branch
        %418 = sbr.rel (%p415) target = $region76
      $region75: #{tpu_custom_call.1} parent=5 // pred_region
        %s419 = ssub.s32 %s23, 1
        %p420 = scmp.lt.s32.totalorder %s28, 1
        %s421 = scalar_select %p420, %s28, 1
        %s422 = smul.addr %s421, 8
        %s423 = scalar_lea.vmem %s0, %s422
        %p424 = pneg %p49
        %p425 = pneg %p46
        %p426 = pneg %p70
        %p427 = pneg %p67
        %p428 = pneg %p91
        %p429 = pneg %p88
        %p430 = pneg %p112
        %p431 = pneg %p109
        %p432 = pneg %p133
        %p433 = pneg %p130
        %p434 = pneg %p154
        %p435 = pneg %p151
        %p436 = pneg %p175
        %p437 = pneg %p172
        %p438 = pneg %p196
        %p439 = pneg %p193
        %p440 = pneg %p217
        %p441 = pneg %p214
        %p442 = pneg %p238
        %p443 = pneg %p235
        %p444 = pneg %p259
        %p445 = pneg %p256
        %p446 = pneg %p280
        %p447 = pneg %p277
        %p448 = pneg %p301
        %p449 = pneg %p298
        %p450 = pneg %p322
        %p451 = pneg %p319
        %p452 = pneg %p348
        %p453 = pneg %p345
        %s454 = sand.u32 %s335, 1
        %s455 = scalar_lea.sflag [#allocation3], %s454
        %s456 = sand.u32 %s335, 1
        %s457 = smul.addr %s456, 8
        %s458 = scalar_lea.vmem [#allocation2], %s457
        %p459 = scmp.lt.s32.totalorder %s28, 1
        %s460 = scalar_select %p459, %s28, 1
        %s461 = smul.addr %s460, 8
        %s462 = scalar_lea.vmem %s0, %s461
        %v464 = vld [vmem:[%s462] sm:$0xff]
        %v465 = vld [vmem:[%s1] sm:$0xff]
        %v466 = vadd.f32 %v464, %v465
        %v467 = vpack.c.bf16 %v466, %v466
        %v468 = vld [vmem:[%s2] sm:$0xf]
        %v469 = vld [vmem:[%s2 + $0x4] sm:$0xf]
        %v470 = vld [vmem:[%s2 + $0x8] sm:$0xf]
        %v471 = vld [vmem:[%s2 + $0xc] sm:$0xf]
        %v472 = vld [vmem:[%s3] sm:$0x1]
        %v474 = vlaneseq
        %v475 = vshrl.u32 %v474, 7
        %v476 = vsub.s32 0, %v475
        %v477 = vrot.slane %v472, %v476
        %v483 = vunpack.c.l.b16 %v468
        %v484 = vunpack.c.l.b16 %v469
        %v485 = vunpack.c.l.b16 %v470
        %v486 = vunpack.c.l.b16 %v471
        %v487 = vpack.c.b16 %v484, %v483
        %v488 = vpack.c.b16 %v486, %v485
        %vm491 = vcmask 261120
        %v493 = vsel %vm491, %v467, 0
        %495 = vmatprep.subr.bf16.mxu0 0
        %496 = vmatpush1.bf16.msra.mxu0 %v487
        %497 = vmatprep.subr.bf16.mxu0 0
        %498 = vmatpush1.bf16.msra.mxu0 %v488
        %499 = vmatprep.subr.bf16.mxu0 0
        %500 = vmatpush1.bf16.msra.mxu0 0
        %501 = vmatprep.subr.bf16.mxu0 0
        %502 = vmatpush1.bf16.msra.mxu0 0
        %503 = vmatprep.subr.bf16.mxu0 0
        %504 = vmatpush1.bf16.msra.mxu0 0
        %505 = vmatprep.subr.bf16.mxu0 0
        %506 = vmatpush1.bf16.msra.mxu0 0
        %507 = vmatprep.subr.bf16.mxu0 0
        %508 = vmatpush1.bf16.msra.mxu0 0
        %509 = vmatprep.subr.bf16.mxu0 0
        %510 = vmatpush1.bf16.msra.mxu0 0
        %511 = vmatprep.subr.bf16.mxu0 0
        %512 = vmatpush1.bf16.msra.mxu0 0
        %513 = vmatprep.subr.bf16.mxu0 0
        %514 = vmatpush1.bf16.msra.mxu0 0
        %515 = vmatprep.subr.bf16.mxu0 0
        %516 = vmatpush1.bf16.msra.mxu0 0
        %517 = vmatprep.subr.bf16.mxu0 0
        %518 = vmatpush1.bf16.msra.mxu0 0
        %519 = vmatprep.subr.bf16.mxu0 0
        %520 = vmatpush1.bf16.msra.mxu0 0
        %521 = vmatprep.subr.bf16.mxu0 0
        %522 = vmatpush1.bf16.msra.mxu0 0
        %523 = vmatprep.subr.bf16.mxu0 0
        %524 = vmatpush1.bf16.msra.mxu0 0
        %525 = vmatprep.subr.bf16.mxu0 0
        %526 = vmatpush1.bf16.msra.mxu0 0
        %527 = vmatprep.mubr.bf16.mxu0 0
        %528 = vmatmul.mubr.bf16.gmra.mrb[0].mxu0 %v493
        %v529 = vpop.f32.mrb[0].mxu0
        %v530 = vadd.f32 %v477, %v529
        %v531 = vpop.f32.mrb[0].mxu0
        %v532 = vpop.f32.mrb[0].mxu0
        %v533 = vpop.f32.mrb[0].mxu0
        %534 = vdwg.mxu0
        %v535 = vpack.c.bf16 %v530, %v530
        %537 = vrot.lane.b32.xlu0 %v535, 96
        %v538 = vpop.permute.xlu0 %537
        %vm539 = vcmask 64512
        %v541 = vsel %vm539, %v535, 0
        %v544 = vsel %vm539, %v538, 0
        %546 = vmatprep.subr.bf16.mxu0 0
        %547 = vmatpush1.bf16.xpose.msra.mxu0 %v544
        %548 = vmatprep.subr.bf16.mxu0 0
        %549 = vmatpush1.bf16.xpose.msra.mxu0 0
        %550 = vmatprep.subr.bf16.mxu0 0
        %551 = vmatpush1.bf16.xpose.msra.mxu0 0
        %552 = vmatprep.subr.bf16.mxu0 0
        %553 = vmatpush1.bf16.xpose.msra.mxu0 0
        %554 = vmatprep.subr.bf16.mxu0 0
        %555 = vmatpush1.bf16.xpose.msra.mxu0 0
        %556 = vmatprep.subr.bf16.mxu0 0
        %557 = vmatpush1.bf16.xpose.msra.mxu0 0
        %558 = vmatprep.subr.bf16.mxu0 0
        %559 = vmatpush1.bf16.xpose.msra.mxu0 0
        %560 = vmatprep.subr.bf16.mxu0 0
        %561 = vmatpush1.bf16.xpose.msra.mxu0 0
        %562 = vmatprep.subr.bf16.mxu0 0
        %563 = vmatpush1.bf16.xpose.msra.mxu0 0
        %564 = vmatprep.subr.bf16.mxu0 0
        %565 = vmatpush1.bf16.xpose.msra.mxu0 0
        %566 = vmatprep.subr.bf16.mxu0 0
        %567 = vmatpush1.bf16.xpose.msra.mxu0 0
        %568 = vmatprep.subr.bf16.mxu0 0
        %569 = vmatpush1.bf16.xpose.msra.mxu0 0
        %570 = vmatprep.subr.bf16.mxu0 0
        %571 = vmatpush1.bf16.xpose.msra.mxu0 0
        %572 = vmatprep.subr.bf16.mxu0 0
        %573 = vmatpush1.bf16.xpose.msra.mxu0 0
        %574 = vmatprep.subr.bf16.mxu0 0
        %575 = vmatpush1.bf16.xpose.msra.mxu0 0
        %576 = vmatprep.subr.bf16.mxu0 0
        %577 = vmatpush1.bf16.xpose.msra.mxu0 0
        %578 = vmatprep.mubr.bf16.mxu0 0
        %579 = vmatmul.mubr.bf16.gmra.mrb[0].mxu0 %v541
        %v580 = vpop.f32.mrb[0].mxu0
        %v581 = vadd.f32 0.0, %v580
        %v582 = vpop.f32.mrb[0].mxu0
        %v583 = vpop.f32.mrb[0].mxu0
        %v584 = vpop.f32.mrb[0].mxu0
        %585 = vdwg.mxu0
        %v586 = vsel %vm539, %v581, -inf
        %587 = vmax.xlane.f32.xlu0 %v586
        %v588 = vpop.xlane.xlu0 %587
        %v589 = vsub.f32 %v581, %v588
        %v590 = vmul.f32 %v589, 1.442695
        %v591 = vpow.pop %v590
        %v592 = vsel %vm539, %v591, 0.0
        %593 = vadd.xlane.f32.xlu0 %v592
        %v594 = vpop.xlane.xlu0 %593
        %v595 = vrcp.pop %v594
        %v596 = vmul.f32 %v591, %v595
        %v597 = vpack.c.bf16 %v596, %v596
        %598 = vrot.lane.b32.xlu0 %v535, 64
        %v599 = vpop.permute.xlu0 %598
        %v601 = vsel %vm539, %v597, 0
        %vm603 = vcmask 1043456
        %v605 = vsel %vm603, %v599, 0
        %607 = vmatprep.subr.bf16.mxu0 0
        %608 = vmatpush1.bf16.msra.mxu0 %v605
        %609 = vmatprep.subr.bf16.mxu0 0
        %610 = vmatpush1.bf16.msra.mxu0 0
        %611 = vmatprep.subr.bf16.mxu0 0
        %612 = vmatpush1.bf16.msra.mxu0 0
        %613 = vmatprep.subr.bf16.mxu0 0
        %614 = vmatpush1.bf16.msra.mxu0 0
        %615 = vmatprep.subr.bf16.mxu0 0
        %616 = vmatpush1.bf16.msra.mxu0 0
        %617 = vmatprep.subr.bf16.mxu0 0
        %618 = vmatpush1.bf16.msra.mxu0 0
        %619 = vmatprep.subr.bf16.mxu0 0
        %620 = vmatpush1.bf16.msra.mxu0 0
        %621 = vmatprep.subr.bf16.mxu0 0
        %622 = vmatpush1.bf16.msra.mxu0 0
        %623 = vmatprep.subr.bf16.mxu0 0
        %624 = vmatpush1.bf16.msra.mxu0 0
        %625 = vmatprep.subr.bf16.mxu0 0
        %626 = vmatpush1.bf16.msra.mxu0 0
        %627 = vmatprep.subr.bf16.mxu0 0
        %628 = vmatpush1.bf16.msra.mxu0 0
        %629 = vmatprep.subr.bf16.mxu0 0
        %630 = vmatpush1.bf16.msra.mxu0 0
        %631 = vmatprep.subr.bf16.mxu0 0
        %632 = vmatpush1.bf16.msra.mxu0 0
        %633 = vmatprep.subr.bf16.mxu0 0
        %634 = vmatpush1.bf16.msra.mxu0 0
        %635 = vmatprep.subr.bf16.mxu0 0
        %636 = vmatpush1.bf16.msra.mxu0 0
        %637 = vmatprep.subr.bf16.mxu0 0
        %638 = vmatpush1.bf16.msra.mxu0 0
        %639 = vmatprep.mubr.bf16.mxu0 0
        %640 = vmatmul.mubr.bf16.gmra.mrb[0].mxu0 %v601
        %v641 = vpop.f32.mrb[0].mxu0
        %v642 = vadd.f32 0.0, %v641
        %v643 = vpop.f32.mrb[0].mxu0
        %v644 = vpop.f32.mrb[0].mxu0
        %v645 = vpop.f32.mrb[0].mxu0
        %646 = vdwg.mxu0
        %v647 = vpack.c.bf16 %v642, %v642
        %v648 = vld [vmem:[%s4] sm:$0xf]
        %649 = vrot.lane.b32.xlu0 %v535, 120
        %v650 = vpop.permute.xlu0 %649
        %651 = vrot.lane.b32.xlu0 %v535, 88
        %v652 = vpop.permute.xlu0 %651
        %v654 = vsel %vm539, %v650, 0
        %v657 = vsel %vm539, %v652, 0
        %659 = vmatprep.subr.bf16.mxu0 0
        %660 = vmatpush1.bf16.xpose.msra.mxu0 %v657
        %661 = vmatprep.subr.bf16.mxu0 0
        %662 = vmatpush1.bf16.xpose.msra.mxu0 0
        %663 = vmatprep.subr.bf16.mxu0 0
        %664 = vmatpush1.bf16.xpose.msra.mxu0 0
        %665 = vmatprep.subr.bf16.mxu0 0
        %666 = vmatpush1.bf16.xpose.msra.mxu0 0
        %667 = vmatprep.subr.bf16.mxu0 0
        %668 = vmatpush1.bf16.xpose.msra.mxu0 0
        %669 = vmatprep.subr.bf16.mxu0 0
        %670 = vmatpush1.bf16.xpose.msra.mxu0 0
        %671 = vmatprep.subr.bf16.mxu0 0
        %672 = vmatpush1.bf16.xpose.msra.mxu0 0
        %673 = vmatprep.subr.bf16.mxu0 0
        %674 = vmatpush1.bf16.xpose.msra.mxu0 0
        %675 = vmatprep.subr.bf16.mxu0 0
        %676 = vmatpush1.bf16.xpose.msra.mxu0 0
        %677 = vmatprep.subr.bf16.mxu0 0
        %678 = vmatpush1.bf16.xpose.msra.mxu0 0
        %679 = vmatprep.subr.bf16.mxu0 0
        %680 = vmatpush1.bf16.xpose.msra.mxu0 0
        %681 = vmatprep.subr.bf16.mxu0 0
        %682 = vmatpush1.bf16.xpose.msra.mxu0 0
        %683 = vmatprep.subr.bf16.mxu0 0
        %684 = vmatpush1.bf16.xpose.msra.mxu0 0
        %685 = vmatprep.subr.bf16.mxu0 0
        %686 = vmatpush1.bf16.xpose.msra.mxu0 0
        %687 = vmatprep.subr.bf16.mxu0 0
        %688 = vmatpush1.bf16.xpose.msra.mxu0 0
        %689 = vmatprep.subr.bf16.mxu0 0
        %690 = vmatpush1.bf16.xpose.msra.mxu0 0
        %691 = vmatprep.mubr.bf16.mxu0 0
        %692 = vmatmul.mubr.bf16.gmra.mrb[0].mxu0 %v654
        %v693 = vpop.f32.mrb[0].mxu0
        %v694 = vadd.f32 0.0, %v693
        %v695 = vpop.f32.mrb[0].mxu0
        %v696 = vpop.f32.mrb[0].mxu0
        %v697 = vpop.f32.mrb[0].mxu0
        %698 = vdwg.mxu0
        %v699 = vsel %vm539, %v694, -inf
        %700 = vmax.xlane.f32.xlu0 %v699
        %v701 = vpop.xlane.xlu0 %700
        %v702 = vsub.f32 %v694, %v701
        %v703 = vmul.f32 %v702, 1.442695
        %v704 = vpow.pop %v703
        %v705 = vsel %vm539, %v704, 0.0
        %706 = vadd.xlane.f32.xlu0 %v705
        %v707 = vpop.xlane.xlu0 %706
        %v708 = vrcp.pop %v707
        %v709 = vmul.f32 %v704, %v708
        %v710 = vpack.c.bf16 %v709, %v709
        %711 = vrot.lane.b32.xlu0 %v535, 56
        %v712 = vpop.permute.xlu0 %711
        %v714 = vsel %vm539, %v710, 0
        %v717 = vsel %vm603, %v712, 0
        %719 = vmatprep.subr.bf16.mxu0 0
        %720 = vmatpush1.bf16.msra.mxu0 %v717
        %721 = vmatprep.subr.bf16.mxu0 0
        %722 = vmatpush1.bf16.msra.mxu0 0
        %723 = vmatprep.subr.bf16.mxu0 0
        %724 = vmatpush1.bf16.msra.mxu0 0
        %725 = vmatprep.subr.bf16.mxu0 0
        %726 = vmatpush1.bf16.msra.mxu0 0
        %727 = vmatprep.subr.bf16.mxu0 0
        %728 = vmatpush1.bf16.msra.mxu0 0
        %729 = vmatprep.subr.bf16.mxu0 0
        %730 = vmatpush1.bf16.msra.mxu0 0
        %731 = vmatprep.subr.bf16.mxu0 0
        %732 = vmatpush1.bf16.msra.mxu0 0
        %733 = vmatprep.subr.bf16.mxu0 0
        %734 = vmatpush1.bf16.msra.mxu0 0
        %735 = vmatprep.subr.bf16.mxu0 0
        %736 = vmatpush1.bf16.msra.mxu0 0
        %737 = vmatprep.subr.bf16.mxu0 0
        %738 = vmatpush1.bf16.msra.mxu0 0
        %739 = vmatprep.subr.bf16.mxu0 0
        %740 = vmatpush1.bf16.msra.mxu0 0
        %741 = vmatprep.subr.bf16.mxu0 0
        %742 = vmatpush1.bf16.msra.mxu0 0
        %743 = vmatprep.subr.bf16.mxu0 0
        %744 = vmatpush1.bf16.msra.mxu0 0
        %745 = vmatprep.subr.bf16.mxu0 0
        %746 = vmatpush1.bf16.msra.mxu0 0
        %747 = vmatprep.subr.bf16.mxu0 0
        %748 = vmatpush1.bf16.msra.mxu0 0
        %749 = vmatprep.subr.bf16.mxu0 0
        %750 = vmatpush1.bf16.msra.mxu0 0
        %751 = vmatprep.mubr.bf16.mxu0 0
        %752 = vmatmul.mubr.bf16.gmra.mrb[0].mxu0 %v714
        %v753 = vpop.f32.mrb[0].mxu0
        %v754 = vadd.f32 0.0, %v753
        %v755 = vpop.f32.mrb[0].mxu0
        %v756 = vpop.f32.mrb[0].mxu0
        %v757 = vpop.f32.mrb[0].mxu0
        %758 = vdwg.mxu0
        %v759 = vpack.c.bf16 %v754, %v754
        %v760 = vld [vmem:[%s4 + $0x4] sm:$0xf]
        %v762 = vsel %vm539, %v759, 0
        %v765 = vsel %vm603, %v760, 0
        %767 = vmatprep.subr.bf16.mxu0 0
        %768 = vmatpush1.bf16.msra.mxu0 %v765
        %769 = vmatprep.subr.bf16.mxu0 0
        %770 = vmatpush1.bf16.msra.mxu0 0
        %771 = vmatprep.subr.bf16.mxu0 0
        %772 = vmatpush1.bf16.msra.mxu0 0
        %773 = vmatprep.subr.bf16.mxu0 0
        %774 = vmatpush1.bf16.msra.mxu0 0
        %775 = vmatprep.subr.bf16.mxu0 0
        %776 = vmatpush1.bf16.msra.mxu0 0
        %777 = vmatprep.subr.bf16.mxu0 0
        %778 = vmatpush1.bf16.msra.mxu0 0
        %779 = vmatprep.subr.bf16.mxu0 0
        %780 = vmatpush1.bf16.msra.mxu0 0
        %781 = vmatprep.subr.bf16.mxu0 0
        %782 = vmatpush1.bf16.msra.mxu0 0
        %783 = vmatprep.subr.bf16.mxu0 0
        %784 = vmatpush1.bf16.msra.mxu0 0
        %785 = vmatprep.subr.bf16.mxu0 0
        %786 = vmatpush1.bf16.msra.mxu0 0
        %787 = vmatprep.subr.bf16.mxu0 0
        %788 = vmatpush1.bf16.msra.mxu0 0
        %789 = vmatprep.subr.bf16.mxu0 0
        %790 = vmatpush1.bf16.msra.mxu0 0
        %791 = vmatprep.subr.bf16.mxu0 0
        %792 = vmatpush1.bf16.msra.mxu0 0
        %793 = vmatprep.subr.bf16.mxu0 0
        %794 = vmatpush1.bf16.msra.mxu0 0
        %795 = vmatprep.subr.bf16.mxu0 0
        %796 = vmatpush1.bf16.msra.mxu0 0
        %797 = vmatprep.subr.bf16.mxu0 0
        %798 = vmatpush1.bf16.msra.mxu0 0
        %799 = vmatprep.mubr.bf16.mxu0 0
        %800 = vmatmul.mubr.bf16.gmra.mrb[0].mxu0 %v762
        %v801 = vpop.f32.mrb[0].mxu0
        %v802 = vadd.f32 0.0, %v801
        %v803 = vpop.f32.mrb[0].mxu0
        %v804 = vpop.f32.mrb[0].mxu0
        %v805 = vpop.f32.mrb[0].mxu0
        %806 = vdwg.mxu0
        %v808 = vsel %vm539, %v647, 0
        %v811 = vsel %vm603, %v648, 0
        %813 = vmatprep.subr.bf16.mxu0 0
        %814 = vmatpush1.bf16.msra.mxu0 %v811
        %815 = vmatprep.subr.bf16.mxu0 0
        %816 = vmatpush1.bf16.msra.mxu0 0
        %817 = vmatprep.subr.bf16.mxu0 0
        %818 = vmatpush1.bf16.msra.mxu0 0
        %819 = vmatprep.subr.bf16.mxu0 0
        %820 = vmatpush1.bf16.msra.mxu0 0
        %821 = vmatprep.subr.bf16.mxu0 0
        %822 = vmatpush1.bf16.msra.mxu0 0
        %823 = vmatprep.subr.bf16.mxu0 0
        %824 = vmatpush1.bf16.msra.mxu0 0
        %825 = vmatprep.subr.bf16.mxu0 0
        %826 = vmatpush1.bf16.msra.mxu0 0
        %827 = vmatprep.subr.bf16.mxu0 0
        %828 = vmatpush1.bf16.msra.mxu0 0
        %829 = vmatprep.subr.bf16.mxu0 0
        %830 = vmatpush1.bf16.msra.mxu0 0
        %831 = vmatprep.subr.bf16.mxu0 0
        %832 = vmatpush1.bf16.msra.mxu0 0
        %833 = vmatprep.subr.bf16.mxu0 0
        %834 = vmatpush1.bf16.msra.mxu0 0
        %835 = vmatprep.subr.bf16.mxu0 0
        %836 = vmatpush1.bf16.msra.mxu0 0
        %837 = vmatprep.subr.bf16.mxu0 0
        %838 = vmatpush1.bf16.msra.mxu0 0
        %839 = vmatprep.subr.bf16.mxu0 0
        %840 = vmatpush1.bf16.msra.mxu0 0
        %841 = vmatprep.subr.bf16.mxu0 0
        %842 = vmatpush1.bf16.msra.mxu0 0
        %843 = vmatprep.subr.bf16.mxu0 0
        %844 = vmatpush1.bf16.msra.mxu0 0
        %845 = vmatprep.mubr.bf16.mxu0 0
        %846 = vmatmul.mubr.bf16.gmra.mrb[0].mxu0 %v808
        %v847 = vpop.f32.mrb[0].mxu0
        %v848 = vadd.f32 %v802, %v847
        %v849 = vpop.f32.mrb[0].mxu0
        %v850 = vpop.f32.mrb[0].mxu0
        %v851 = vpop.f32.mrb[0].mxu0
        %852 = vdwg.mxu0
        %853 = vrot.lane.b32.xlu0 %v535, 112
        %v854 = vpop.permute.xlu0 %853
        %855 = vrot.lane.b32.xlu0 %v535, 80
        %v856 = vpop.permute.xlu0 %855
        %v858 = vsel %vm539, %v854, 0
        %v861 = vsel %vm539, %v856, 0
        %863 = vmatprep.subr.bf16.mxu0 0
        %864 = vmatpush1.bf16.xpose.msra.mxu0 %v861
        %865 = vmatprep.subr.bf16.mxu0 0
        %866 = vmatpush1.bf16.xpose.msra.mxu0 0
        %867 = vmatprep.subr.bf16.mxu0 0
        %868 = vmatpush1.bf16.xpose.msra.mxu0 0
        %869 = vmatprep.subr.bf16.mxu0 0
        %870 = vmatpush1.bf16.xpose.msra.mxu0 0
        %871 = vmatprep.subr.bf16.mxu0 0
        %872 = vmatpush1.bf16.xpose.msra.mxu0 0
        %873 = vmatprep.subr.bf16.mxu0 0
        %874 = vmatpush1.bf16.xpose.msra.mxu0 0
        %875 = vmatprep.subr.bf16.mxu0 0
        %876 = vmatpush1.bf16.xpose.msra.mxu0 0
        %877 = vmatprep.subr.bf16.mxu0 0
        %878 = vmatpush1.bf16.xpose.msra.mxu0 0
        %879 = vmatprep.subr.bf16.mxu0 0
        %880 = vmatpush1.bf16.xpose.msra.mxu0 0
        %881 = vmatprep.subr.bf16.mxu0 0
        %882 = vmatpush1.bf16.xpose.msra.mxu0 0
        %883 = vmatprep.subr.bf16.mxu0 0
        %884 = vmatpush1.bf16.xpose.msra.mxu0 0
        %885 = vmatprep.subr.bf16.mxu0 0
        %886 = vmatpush1.bf16.xpose.msra.mxu0 0
        %887 = vmatprep.subr.bf16.mxu0 0
        %888 = vmatpush1.bf16.xpose.msra.mxu0 0
        %889 = vmatprep.subr.bf16.mxu0 0
        %890 = vmatpush1.bf16.xpose.msra.mxu0 0
        %891 = vmatprep.subr.bf16.mxu0 0
        %892 = vmatpush1.bf16.xpose.msra.mxu0 0
        %893 = vmatprep.subr.bf16.mxu0 0
        %894 = vmatpush1.bf16.xpose.msra.mxu0 0
        %895 = vmatprep.mubr.bf16.mxu0 0
        %896 = vmatmul.mubr.bf16.gmra.mrb[0].mxu0 %v858
        %v897 = vpop.f32.mrb[0].mxu0
        %v898 = vadd.f32 0.0, %v897
        %v899 = vpop.f32.mrb[0].mxu0
        %v900 = vpop.f32.mrb[0].mxu0
        %v901 = vpop.f32.mrb[0].mxu0
        %902 = vdwg.mxu0
        %v903 = vsel %vm539, %v898, -inf
        %904 = vmax.xlane.f32.xlu0 %v903
        %v905 = vpop.xlane.xlu0 %904
        %v906 = vsub.f32 %v898, %v905
        %v907 = vmul.f32 %v906, 1.442695
        %v908 = vpow.pop %v907
        %v909 = vsel %vm539, %v908, 0.0
        %910 = vadd.xlane.f32.xlu0 %v909
        %v911 = vpop.xlane.xlu0 %910
        %v912 = vrcp.pop %v911
        %v913 = vmul.f32 %v908, %v912
        %v914 = vpack.c.bf16 %v913, %v913
        %915 = vrot.lane.b32.xlu0 %v535, 48
        %v916 = vpop.permute.xlu0 %915
        %v918 = vsel %vm539, %v914, 0
        %v921 = vsel %vm603, %v916, 0
        %923 = vmatprep.subr.bf16.mxu0 0
        %924 = vmatpush1.bf16.msra.mxu0 %v921
        %925 = vmatprep.subr.bf16.mxu0 0
        %926 = vmatpush1.bf16.msra.mxu0 0
        %927 = vmatprep.subr.bf16.mxu0 0
        %928 = vmatpush1.bf16.msra.mxu0 0
        %929 = vmatprep.subr.bf16.mxu0 0
        %930 = vmatpush1.bf16.msra.mxu0 0
        %931 = vmatprep.subr.bf16.mxu0 0
        %932 = vmatpush1.bf16.msra.mxu0 0
        %933 = vmatprep.subr.bf16.mxu0 0
        %934 = vmatpush1.bf16.msra.mxu0 0
        %935 = vmatprep.subr.bf16.mxu0 0
        %936 = vmatpush1.bf16.msra.mxu0 0
        %937 = vmatprep.subr.bf16.mxu0 0
        %938 = vmatpush1.bf16.msra.mxu0 0
        %939 = vmatprep.subr.bf16.mxu0 0
        %940 = vmatpush1.bf16.msra.mxu0 0
        %941 = vmatprep.subr.bf16.mxu0 0
        %942 = vmatpush1.bf16.msra.mxu0 0
        %943 = vmatprep.subr.bf16.mxu0 0
        %944 = vmatpush1.bf16.msra.mxu0 0
        %945 = vmatprep.subr.bf16.mxu0 0
        %946 = vmatpush1.bf16.msra.mxu0 0
        %947 = vmatprep.subr.bf16.mxu0 0
        %948 = vmatpush1.bf16.msra.mxu0 0
        %949 = vmatprep.subr.bf16.mxu0 0
        %950 = vmatpush1.bf16.msra.mxu0 0
        %951 = vmatprep.subr.bf16.mxu0 0
        %952 = vmatpush1.bf16.msra.mxu0 0
        %953 = vmatprep.subr.bf16.mxu0 0
        %954 = vmatpush1.bf16.msra.mxu0 0
        %955 = vmatprep.mubr.bf16.mxu0 0
        %956 = vmatmul.mubr.bf16.gmra.mrb[0].mxu0 %v918
        %v957 = vpop.f32.mrb[0].mxu0
        %v958 = vadd.f32 0.0, %v957
        %v959 = vpop.f32.mrb[0].mxu0
        %v960 = vpop.f32.mrb[0].mxu0
        %v961 = vpop.f32.mrb[0].mxu0
        %962 = vdwg.mxu0
        %v963 = vpack.c.bf16 %v958, %v958
        %v964 = vld [vmem:[%s4 + $0x8] sm:$0xf]
        %v966 = vsel %vm539, %v963, 0
        %v969 = vsel %vm603, %v964, 0
        %971 = vmatprep.subr.bf16.mxu0 0
        %972 = vmatpush1.bf16.msra.mxu0 %v969
        %973 = vmatprep.subr.bf16.mxu0 0
        %974 = vmatpush1.bf16.msra.mxu0 0
        %975 = vmatprep.subr.bf16.mxu0 0
        %976 = vmatpush1.bf16.msra.mxu0 0
        %977 = vmatprep.subr.bf16.mxu0 0
        %978 = vmatpush1.bf16.msra.mxu0 0
        %979 = vmatprep.subr.bf16.mxu0 0
        %980 = vmatpush1.bf16.msra.mxu0 0
        %981 = vmatprep.subr.bf16.mxu0 0
        %982 = vmatpush1.bf16.msra.mxu0 0
        %983 = vmatprep.subr.bf16.mxu0 0
        %984 = vmatpush1.bf16.msra.mxu0 0
        %985 = vmatprep.subr.bf16.mxu0 0
        %986 = vmatpush1.bf16.msra.mxu0 0
        %987 = vmatprep.subr.bf16.mxu0 0
        %988 = vmatpush1.bf16.msra.mxu0 0
        %989 = vmatprep.subr.bf16.mxu0 0
        %990 = vmatpush1.bf16.msra.mxu0 0
        %991 = vmatprep.subr.bf16.mxu0 0
        %992 = vmatpush1.bf16.msra.mxu0 0
        %993 = vmatprep.subr.bf16.mxu0 0
        %994 = vmatpush1.bf16.msra.mxu0 0
        %995 = vmatprep.subr.bf16.mxu0 0
        %996 = vmatpush1.bf16.msra.mxu0 0
        %997 = vmatprep.subr.bf16.mxu0 0
        %998 = vmatpush1.bf16.msra.mxu0 0
        %999 = vmatprep.subr.bf16.mxu0 0
        %1000 = vmatpush1.bf16.msra.mxu0 0
        %1001 = vmatprep.subr.bf16.mxu0 0
        %1002 = vmatpush1.bf16.msra.mxu0 0
        %1003 = vmatprep.mubr.bf16.mxu0 0
        %1004 = vmatmul.mubr.bf16.gmra.mrb[0].mxu0 %v966
        %v1005 = vpop.f32.mrb[0].mxu0
        %v1006 = vadd.f32 0.0, %v1005
        %v1007 = vpop.f32.mrb[0].mxu0
        %v1008 = vpop.f32.mrb[0].mxu0
        %v1009 = vpop.f32.mrb[0].mxu0
        %1010 = vdwg.mxu0
        %v1011 = vadd.f32 %v848, %v1006
        %1012 = vrot.lane.b32.xlu0 %v535, 104
        %v1013 = vpop.permute.xlu0 %1012
        %1014 = vrot.lane.b32.xlu0 %v535, 72
        %v1015 = vpop.permute.xlu0 %1014
        %v1017 = vsel %vm539, %v1013, 0
        %v1020 = vsel %vm539, %v1015, 0
        %1022 = vmatprep.subr.bf16.mxu0 0
        %1023 = vmatpush1.bf16.xpose.msra.mxu0 %v1020
        %1024 = vmatprep.subr.bf16.mxu0 0
        %1025 = vmatpush1.bf16.xpose.msra.mxu0 0
        %1026 = vmatprep.subr.bf16.mxu0 0
        %1027 = vmatpush1.bf16.xpose.msra.mxu0 0
        %1028 = vmatprep.subr.bf16.mxu0 0
        %1029 = vmatpush1.bf16.xpose.msra.mxu0 0
        %1030 = vmatprep.subr.bf16.mxu0 0
        %1031 = vmatpush1.bf16.xpose.msra.mxu0 0
        %1032 = vmatprep.subr.bf16.mxu0 0
        %1033 = vmatpush1.bf16.xpose.msra.mxu0 0
        %1034 = vmatprep.subr.bf16.mxu0 0
        %1035 = vmatpush1.bf16.xpose.msra.mxu0 0
        %1036 = vmatprep.subr.bf16.mxu0 0
        %1037 = vmatpush1.bf16.xpose.msra.mxu0 0
        %1038 = vmatprep.subr.bf16.mxu0 0
        %1039 = vmatpush1.bf16.xpose.msra.mxu0 0
        %1040 = vmatprep.subr.bf16.mxu0 0
        %1041 = vmatpush1.bf16.xpose.msra.mxu0 0
        %1042 = vmatprep.subr.bf16.mxu0 0
        %1043 = vmatpush1.bf16.xpose.msra.mxu0 0
        %1044 = vmatprep.subr.bf16.mxu0 0
        %1045 = vmatpush1.bf16.xpose.msra.mxu0 0
        %1046 = vmatprep.subr.bf16.mxu0 0
        %1047 = vmatpush1.bf16.xpose.msra.mxu0 0
        %1048 = vmatprep.subr.bf16.mxu0 0
        %1049 = vmatpush1.bf16.xpose.msra.mxu0 0
        %1050 = vmatprep.subr.bf16.mxu0 0
        %1051 = vmatpush1.bf16.xpose.msra.mxu0 0
        %1052 = vmatprep.subr.bf16.mxu0 0
        %1053 = vmatpush1.bf16.xpose.msra.mxu0 0
        %1054 = vmatprep.mubr.bf16.mxu0 0
        %1055 = vmatmul.mubr.bf16.gmra.mrb[0].mxu0 %v1017
        %v1056 = vpop.f32.mrb[0].mxu0
        %v1057 = vadd.f32 0.0, %v1056
        %v1058 = vpop.f32.mrb[0].mxu0
        %v1059 = vpop.f32.mrb[0].mxu0
        %v1060 = vpop.f32.mrb[0].mxu0
        %1061 = vdwg.mxu0
        %v1062 = vsel %vm539, %v1057, -inf
        %1063 = vmax.xlane.f32.xlu0 %v1062
        %v1064 = vpop.xlane.xlu0 %1063
        %v1065 = vsub.f32 %v1057, %v1064
        %v1066 = vmul.f32 %v1065, 1.442695
        %v1067 = vpow.pop %v1066
        %v1068 = vsel %vm539, %v1067, 0.0
        %1069 = vadd.xlane.f32.xlu0 %v1068
        %v1070 = vpop.xlane.xlu0 %1069
        %v1071 = vrcp.pop %v1070
        %v1072 = vmul.f32 %v1067, %v1071
        %v1073 = vpack.c.bf16 %v1072, %v1072
        %1074 = vrot.lane.b32.xlu0 %v535, 40
        %v1075 = vpop.permute.xlu0 %1074
        %v1077 = vsel %vm539, %v1073, 0
        %v1080 = vsel %vm603, %v1075, 0
        %1082 = vmatprep.subr.bf16.mxu0 0
        %1083 = vmatpush1.bf16.msra.mxu0 %v1080
        %1084 = vmatprep.subr.bf16.mxu0 0
        %1085 = vmatpush1.bf16.msra.mxu0 0
        %1086 = vmatprep.subr.bf16.mxu0 0
        %1087 = vmatpush1.bf16.msra.mxu0 0
        %1088 = vmatprep.subr.bf16.mxu0 0
        %1089 = vmatpush1.bf16.msra.mxu0 0
        %1090 = vmatprep.subr.bf16.mxu0 0
        %1091 = vmatpush1.bf16.msra.mxu0 0
        %1092 = vmatprep.subr.bf16.mxu0 0
        %1093 = vmatpush1.bf16.msra.mxu0 0
        %1094 = vmatprep.subr.bf16.mxu0 0
        %1095 = vmatpush1.bf16.msra.mxu0 0
        %1096 = vmatprep.subr.bf16.mxu0 0
        %1097 = vmatpush1.bf16.msra.mxu0 0
        %1098 = vmatprep.subr.bf16.mxu0 0
        %1099 = vmatpush1.bf16.msra.mxu0 0
        %1100 = vmatprep.subr.bf16.mxu0 0
        %1101 = vmatpush1.bf16.msra.mxu0 0
        %1102 = vmatprep.subr.bf16.mxu0 0
        %1103 = vmatpush1.bf16.msra.mxu0 0
        %1104 = vmatprep.subr.bf16.mxu0 0
        %1105 = vmatpush1.bf16.msra.mxu0 0
        %1106 = vmatprep.subr.bf16.mxu0 0
        %1107 = vmatpush1.bf16.msra.mxu0 0
        %1108 = vmatprep.subr.bf16.mxu0 0
        %1109 = vmatpush1.bf16.msra.mxu0 0
        %1110 = vmatprep.subr.bf16.mxu0 0
        %1111 = vmatpush1.bf16.msra.mxu0 0
        %1112 = vmatprep.subr.bf16.mxu0 0
        %1113 = vmatpush1.bf16.msra.mxu0 0
        %1114 = vmatprep.mubr.bf16.mxu0 0
        %1115 = vmatmul.mubr.bf16.gmra.mrb[0].mxu0 %v1077
        %v1116 = vpop.f32.mrb[0].mxu0
        %v1117 = vadd.f32 0.0, %v1116
        %v1118 = vpop.f32.mrb[0].mxu0
        %v1119 = vpop.f32.mrb[0].mxu0
        %v1120 = vpop.f32.mrb[0].mxu0
        %1121 = vdwg.mxu0
        %v1122 = vpack.c.bf16 %v1117, %v1117
        %v1123 = vld [vmem:[%s4 + $0xc] sm:$0xf]
        %v1125 = vsel %vm539, %v1122, 0
        %v1128 = vsel %vm603, %v1123, 0
        %1130 = vmatprep.subr.bf16.mxu0 0
        %1131 = vmatpush1.bf16.msra.mxu0 %v1128
        %1132 = vmatprep.subr.bf16.mxu0 0
        %1133 = vmatpush1.bf16.msra.mxu0 0
        %1134 = vmatprep.subr.bf16.mxu0 0
        %1135 = vmatpush1.bf16.msra.mxu0 0
        %1136 = vmatprep.subr.bf16.mxu0 0
        %1137 = vmatpush1.bf16.msra.mxu0 0
        %1138 = vmatprep.subr.bf16.mxu0 0
        %1139 = vmatpush1.bf16.msra.mxu0 0
        %1140 = vmatprep.subr.bf16.mxu0 0
        %1141 = vmatpush1.bf16.msra.mxu0 0
        %1142 = vmatprep.subr.bf16.mxu0 0
        %1143 = vmatpush1.bf16.msra.mxu0 0
        %1144 = vmatprep.subr.bf16.mxu0 0
        %1145 = vmatpush1.bf16.msra.mxu0 0
        %1146 = vmatprep.subr.bf16.mxu0 0
        %1147 = vmatpush1.bf16.msra.mxu0 0
        %1148 = vmatprep.subr.bf16.mxu0 0
        %1149 = vmatpush1.bf16.msra.mxu0 0
        %1150 = vmatprep.subr.bf16.mxu0 0
        %1151 = vmatpush1.bf16.msra.mxu0 0
        %1152 = vmatprep.subr.bf16.mxu0 0
        %1153 = vmatpush1.bf16.msra.mxu0 0
        %1154 = vmatprep.subr.bf16.mxu0 0
        %1155 = vmatpush1.bf16.msra.mxu0 0
        %1156 = vmatprep.subr.bf16.mxu0 0
        %1157 = vmatpush1.bf16.msra.mxu0 0
        %1158 = vmatprep.subr.bf16.mxu0 0
        %1159 = vmatpush1.bf16.msra.mxu0 0
        %1160 = vmatprep.subr.bf16.mxu0 0
        %1161 = vmatpush1.bf16.msra.mxu0 0
        %1162 = vmatprep.mubr.bf16.mxu0 0
        %1163 = vmatmul.mubr.bf16.gmra.mrb[0].mxu0 %v1125
        %v1164 = vpop.f32.mrb[0].mxu0
        %v1165 = vadd.f32 0.0, %v1164
        %v1166 = vpop.f32.mrb[0].mxu0
        %v1167 = vpop.f32.mrb[0].mxu0
        %v1168 = vpop.f32.mrb[0].mxu0
        %1169 = vdwg.mxu0
        %v1170 = vadd.f32 %v1011, %v1165
        %v1171 = vld [vmem:[%s5] sm:$0x1]
        %v1173 = vlaneseq
        %v1174 = vshrl.u32 %v1173, 7
        %v1175 = vsub.s32 0, %v1174
        %v1176 = vrot.slane %v1171, %v1175
        %v1178 = vadd.f32 %v1170, %v1176
        %v1179 = vadd.f32 %v466, %v1178
        %v1180 = vld [vmem:[%s6] sm:$0x1]
        %v1181 = vld [vmem:[%s7] sm:$0x1]
        %v1182 = vsel %vm491, %v1179, 0.0
        %1183 = vadd.xlane.f32.xlu0 %v1182
        %v1184 = vpop.xlane.xlu0 %1183
        %v1185 = vmul.f32 %v1184, 0.03125
        %v1186 = vsub.f32 %v1179, %v1185
        %v1187 = vmul.f32 %v1186, %v1186
        %v1188 = vsel %vm491, %v1187, 0.0
        %1189 = vadd.xlane.f32.xlu0 %v1188
        %v1190 = vpop.xlane.xlu0 %1189
        %v1191 = vmul.f32 %v1190, 0.03125
        %v1192 = vadd.f32 %v1191, 1e-05
        %v1193 = vrsqrt.pop %v1192
        %v1194 = vmul.f32 %v1186, %v1193
        %v1196 = vlaneseq
        %v1197 = vshrl.u32 %v1196, 7
        %v1198 = vsub.s32 0, %v1197
        %v1199 = vrot.slane %v1180, %v1198
        %v1201 = vmul.f32 %v1194, %v1199
        %v1203 = vlaneseq
        %v1204 = vshrl.u32 %v1203, 7
        %v1205 = vsub.s32 0, %v1204
        %v1206 = vrot.slane %v1181, %v1205
        %v1208 = vadd.f32 %v1201, %v1206
        %v1209 = vpack.c.bf16 %v1208, %v1208
        %v1210 = vld [vmem:[%s8] sm:$0xf]
        %v1211 = vld [vmem:[%s8 + $0x4] sm:$0xf]
        %v1212 = vld [vmem:[%s8 + $0x8] sm:$0xf]
        %v1213 = vld [vmem:[%s8 + $0xc] sm:$0xf]
        %v1214 = vld [vmem:[%s9] sm:$0x1]
        %v1216 = vlaneseq
        %v1217 = vshrl.u32 %v1216, 7
        %v1218 = vsub.s32 0, %v1217
        %v1219 = vrot.slane %v1214, %v1218
        %v1225 = vunpack.c.l.b16 %v1210
        %v1226 = vunpack.c.l.b16 %v1211
        %v1227 = vunpack.c.l.b16 %v1212
        %v1228 = vunpack.c.l.b16 %v1213
        %v1229 = vpack.c.b16 %v1226, %v1225
        %v1230 = vpack.c.b16 %v1228, %v1227
        %v1234 = vsel %vm491, %v1209, 0
        %1236 = vmatprep.subr.bf16.mxu0 0
        %1237 = vmatpush1.bf16.msra.mxu0 %v1229
        %1238 = vmatprep.subr.bf16.mxu0 0
        %1239 = vmatpush1.bf16.msra.mxu0 %v1230
        %1240 = vmatprep.subr.bf16.mxu0 0
        %1241 = vmatpush1.bf16.msra.mxu0 0
        %1242 = vmatprep.subr.bf16.mxu0 0
        %1243 = vmatpush1.bf16.msra.mxu0 0
        %1244 = vmatprep.subr.bf16.mxu0 0
        %1245 = vmatpush1.bf16.msra.mxu0 0
        %1246 = vmatprep.subr.bf16.mxu0 0
        %1247 = vmatpush1.bf16.msra.mxu0 0
        %1248 = vmatprep.subr.bf16.mxu0 0
        %1249 = vmatpush1.bf16.msra.mxu0 0
        %1250 = vmatprep.subr.bf16.mxu0 0
        %1251 = vmatpush1.bf16.msra.mxu0 0
        %1252 = vmatprep.subr.bf16.mxu0 0
        %1253 = vmatpush1.bf16.msra.mxu0 0
        %1254 = vmatprep.subr.bf16.mxu0 0
        %1255 = vmatpush1.bf16.msra.mxu0 0
        %1256 = vmatprep.subr.bf16.mxu0 0
        %1257 = vmatpush1.bf16.msra.mxu0 0
        %1258 = vmatprep.subr.bf16.mxu0 0
        %1259 = vmatpush1.bf16.msra.mxu0 0
        %1260 = vmatprep.subr.bf16.mxu0 0
        %1261 = vmatpush1.bf16.msra.mxu0 0
        %1262 = vmatprep.subr.bf16.mxu0 0
        %1263 = vmatpush1.bf16.msra.mxu0 0
        %1264 = vmatprep.subr.bf16.mxu0 0
        %1265 = vmatpush1.bf16.msra.mxu0 0
        %1266 = vmatprep.subr.bf16.mxu0 0
        %1267 = vmatpush1.bf16.msra.mxu0 0
        %1268 = vmatprep.mubr.bf16.mxu0 0
        %1269 = vmatmul.mubr.bf16.gmra.mrb[0].mxu0 %v1234
        %v1270 = vpop.f32.mrb[0].mxu0
        %v1271 = vadd.f32 %v1219, %v1270
        %v1272 = vpop.f32.mrb[0].mxu0
        %v1273 = vpop.f32.mrb[0].mxu0
        %v1274 = vpop.f32.mrb[0].mxu0
        %1275 = vdwg.mxu0
        %v1276 = vmax.f32 %v1271, 0.0
        %v1277 = vpack.c.bf16 %v1276, %v1276
        %v1278 = vld [vmem:[%s10] sm:$0xf]
        %v1279 = vld [vmem:[%s10 + $0x4] sm:$0xf]
        %v1280 = vld [vmem:[%s10 + $0x8] sm:$0xf]
        %v1281 = vld [vmem:[%s10 + $0xc] sm:$0xf]
        %v1282 = vld [vmem:[%s10 + $0x10] sm:$0xf]
        %v1283 = vld [vmem:[%s10 + $0x14] sm:$0xf]
        %v1284 = vld [vmem:[%s10 + $0x18] sm:$0xf]
        %v1285 = vld [vmem:[%s10 + $0x1c] sm:$0xf]
        %v1286 = vld [vmem:[%s10 + $0x20] sm:$0xf]
        %v1287 = vld [vmem:[%s10 + $0x24] sm:$0xf]
        %v1288 = vld [vmem:[%s10 + $0x28] sm:$0xf]
        %v1289 = vld [vmem:[%s10 + $0x2c] sm:$0xf]
        %v1290 = vld [vmem:[%s10 + $0x30] sm:$0xf]
        %v1291 = vld [vmem:[%s10 + $0x34] sm:$0xf]
        %v1292 = vld [vmem:[%s10 + $0x38] sm:$0xf]
        %v1293 = vld [vmem:[%s10 + $0x3c] sm:$0xf]
        %v1294 = vld [vmem:[%s11] sm:$0x1]
        %v1296 = vlaneseq
        %v1297 = vshrl.u32 %v1296, 7
        %v1298 = vsub.s32 0, %v1297
        %v1299 = vrot.slane %v1294, %v1298
        %v1317 = vunpack.c.l.b16 %v1278
        %v1318 = vunpack.c.l.b16 %v1279
        %v1319 = vunpack.c.l.b16 %v1280
        %v1320 = vunpack.c.l.b16 %v1281
        %v1321 = vunpack.c.l.b16 %v1282
        %v1322 = vunpack.c.l.b16 %v1283
        %v1323 = vunpack.c.l.b16 %v1284
        %v1324 = vunpack.c.l.b16 %v1285
        %v1325 = vunpack.c.l.b16 %v1286
        %v1326 = vunpack.c.l.b16 %v1287
        %v1327 = vunpack.c.l.b16 %v1288
        %v1328 = vunpack.c.l.b16 %v1289
        %v1329 = vunpack.c.l.b16 %v1290
        %v1330 = vunpack.c.l.b16 %v1291
        %v1331 = vunpack.c.l.b16 %v1292
        %v1332 = vunpack.c.l.b16 %v1293
        %v1333 = vpack.c.b16 %v1318, %v1317
        %v1334 = vpack.c.b16 %v1320, %v1319
        %v1335 = vpack.c.b16 %v1322, %v1321
        %v1336 = vpack.c.b16 %v1324, %v1323
        %v1337 = vpack.c.b16 %v1326, %v1325
        %v1338 = vpack.c.b16 %v1328, %v1327
        %v1339 = vpack.c.b16 %v1330, %v1329
        %v1340 = vpack.c.b16 %v1332, %v1331
        %1349 = vmatprep.subr.bf16.mxu0 0
        %1350 = vmatpush1.bf16.msra.mxu0 %v1333
        %1351 = vmatprep.subr.bf16.mxu0 0
        %1352 = vmatpush1.bf16.msra.mxu0 %v1334
        %1353 = vmatprep.subr.bf16.mxu0 0
        %1354 = vmatpush1.bf16.msra.mxu0 %v1335
        %1355 = vmatprep.subr.bf16.mxu0 0
        %1356 = vmatpush1.bf16.msra.mxu0 %v1336
        %1357 = vmatprep.subr.bf16.mxu0 0
        %1358 = vmatpush1.bf16.msra.mxu0 %v1337
        %1359 = vmatprep.subr.bf16.mxu0 0
        %1360 = vmatpush1.bf16.msra.mxu0 %v1338
        %1361 = vmatprep.subr.bf16.mxu0 0
        %1362 = vmatpush1.bf16.msra.mxu0 %v1339
        %1363 = vmatprep.subr.bf16.mxu0 0
        %1364 = vmatpush1.bf16.msra.mxu0 %v1340
        %1365 = vmatprep.subr.bf16.mxu0 0
        %1366 = vmatpush1.bf16.msra.mxu0 0
        %1367 = vmatprep.subr.bf16.mxu0 0
        %1368 = vmatpush1.bf16.msra.mxu0 0
        %1369 = vmatprep.subr.bf16.mxu0 0
        %1370 = vmatpush1.bf16.msra.mxu0 0
        %1371 = vmatprep.subr.bf16.mxu0 0
        %1372 = vmatpush1.bf16.msra.mxu0 0
        %1373 = vmatprep.subr.bf16.mxu0 0
        %1374 = vmatpush1.bf16.msra.mxu0 0
        %1375 = vmatprep.subr.bf16.mxu0 0
        %1376 = vmatpush1.bf16.msra.mxu0 0
        %1377 = vmatprep.subr.bf16.mxu0 0
        %1378 = vmatpush1.bf16.msra.mxu0 0
        %1379 = vmatprep.subr.bf16.mxu0 0
        %1380 = vmatpush1.bf16.msra.mxu0 0
        %1381 = vmatprep.mubr.bf16.mxu0 0
        %1382 = vmatmul.mubr.bf16.gmra.mrb[0].mxu0 %v1277
        %v1383 = vpop.f32.mrb[0].mxu0
        %v1384 = vadd.f32 %v1299, %v1383
        %v1385 = vpop.f32.mrb[0].mxu0
        %v1386 = vpop.f32.mrb[0].mxu0
        %v1387 = vpop.f32.mrb[0].mxu0
        %1388 = vdwg.mxu0
        %v1389 = vadd.f32 %v1208, %v1384
        %v1390 = vld [vmem:[%s12] sm:$0x1]
        %v1391 = vld [vmem:[%s13] sm:$0x1]
        %v1392 = vsel %vm491, %v1389, 0.0
        %1393 = vadd.xlane.f32.xlu0 %v1392
        %v1394 = vpop.xlane.xlu0 %1393
        %v1395 = vmul.f32 %v1394, 0.03125
        %v1396 = vsub.f32 %v1389, %v1395
        %v1397 = vmul.f32 %v1396, %v1396
        %v1398 = vsel %vm491, %v1397, 0.0
        %1399 = vadd.xlane.f32.xlu0 %v1398
        %v1400 = vpop.xlane.xlu0 %1399
        %v1401 = vmul.f32 %v1400, 0.03125
        %v1402 = vadd.f32 %v1401, 1e-05
        %v1403 = vrsqrt.pop %v1402
        %v1404 = vmul.f32 %v1396, %v1403
        %v1406 = vlaneseq
        %v1407 = vshrl.u32 %v1406, 7
        %v1408 = vsub.s32 0, %v1407
        %v1409 = vrot.slane %v1390, %v1408
        %v1411 = vmul.f32 %v1404, %v1409
        %v1413 = vlaneseq
        %v1414 = vshrl.u32 %v1413, 7
        %v1415 = vsub.s32 0, %v1414
        %v1416 = vrot.slane %v1391, %v1415
        %v1418 = vadd.f32 %v1411, %v1416
        %1419 = vst.msk [vmem:[%s458] sm:$0xff] %vm491, %v1418
        %s1420 = sand.u32 %s335, 1
        %s1421 = scalar_lea.sflag [#allocation3], %s1420
        %s1422 = sand.u32 %s335, 1
        %s1423 = smul.addr %s1422, 8
        %s1424 = scalar_lea.vmem [#allocation2], %s1423
        // Predicated region
        $region77: #{tpu_custom_call.1} parent=75 // pred_check
          %p1425 = pneg %p345
        $region78: #{tpu_custom_call.1} parent=75 // pred_check_branch
          %1427 = sbr.rel (%p1425) target = $region80
        $region79: #{tpu_custom_call.1} parent=75 // pred_region
          %s1429 = ssub.s32 128, 128
          %1430 = vsyncadd %s1421, %s1429
          %s1431 = smul.addr %s28, 128
          %s1432 = scalar_lea.hbm %s14, %s1431
          %s1434 = sshll.u32 %s1424, 4
          %s1435 = int_to_ptr.vmem [resolvable:$true] %s1434
          %1437 = dma.vmem_to_hbm [thread:$0]  %s1435, 128, %s1432, %s1421
        $region80: #{tpu_custom_call.1} parent=75 // pred_fallthru
          _
      $region76: #{tpu_custom_call.1} parent=5 // pred_fallthru
        _
      %p1438 = scmp.le.s32.totalorder 2, %s23
      // Predicated region
      $region81: #{tpu_custom_call.1} parent=5 // pred_check
        %p1439 = pneg %p1438
      $region82: #{tpu_custom_call.1} parent=5 // pred_check_branch
        %1441 = sbr.rel (%p1439) target = $region84
      $region83: #{tpu_custom_call.1} parent=5 // pred_region
        %s1442 = ssub.s32 %s23, 2
        // Predicated region
        $region85: #{tpu_custom_call.1} parent=83 // pred_check
          %p1443 = pneg %p351
        $region86: #{tpu_custom_call.1} parent=83 // pred_check_branch
          %1445 = sbr.rel (%p1443) target = $region88
        $region87: #{tpu_custom_call.1} parent=83 // pred_region
          %s1446 = sand.u32 %s336, 1
          %s1447 = scalar_lea.sflag [#allocation3], %s1446
          %s1448 = sand.u32 %s336, 1
          %s1449 = smul.addr %s1448, 8
          %s1450 = scalar_lea.vmem [#allocation2], %s1449
          %1451 = dma.done %s1447, 128
        $region88: #{tpu_custom_call.1} parent=83 // pred_fallthru
          _
      $region84: #{tpu_custom_call.1} parent=5 // pred_fallthru
        _
    $region6: #{tpu_custom_call.1} parent=1 // loop_footer
      %s27 = sadd.s32 1, %s23
    $region7: #{tpu_custom_call.1} parent=1 // loop_footer_branch
      %22 = sbr.rel target = $region3
    $region8: #{tpu_custom_call.1} parent=1 // loop_exit
      _
    %1452 = vsyncpa [#allocation3], 1
    %s1453 = scalar_lea.sflag [#allocation3], 1
    %1454 = vsyncpa %s1453, 1

</llo_original>
